<compile_context>
chip_gen: v7x
topology: tpu7x:2x2x1
jax: 0.10.0
libtpu: 0.0.40
codegen_flags: <defaults>
</compile_context>

<pallas_src>
import math
from functools import partial

import jax
import jax.numpy as jnp
from jax import lax
from jax.experimental import pallas as pl
from jax.experimental.pallas import tpu as pltpu


# ----------------------------------------------------------------------------------------
# Pallas kernel
# ----------------------------------------------------------------------------------------
def _mab_kernel(q_in_ref, kv_in_ref, wq_ref, wkv_ref, wo_ref, vec_ref, out_ref,
                *, n_heads: int, layer_norm: bool, flat_out: bool):
    bt, nq, _ = q_in_ref.shape
    _, nkv, _ = kv_in_ref.shape
    size = wq_ref.shape[1]
    hs = size // n_heads
    eps = 1e-5
    f32 = jnp.float32
    bf16 = jnp.bfloat16

    # Inputs arrive in bf16 (cast in the wrapper); flatten the batch tile so the
    # projections and FFN run as big MXU matmuls.
    q2 = q_in_ref[...].reshape(bt * nq, q_in_ref.shape[2])      # (Bt*Nq, size_Q) bf16
    kv2 = kv_in_ref[...].reshape(bt * nkv, kv_in_ref.shape[2])  # (Bt*Nkv, size_KV) bf16

    # Packed per-feature vectors: rows = [bq, bk(scaled), bv, bo, g0, be0, g1, be1]
    bq = vec_ref[0:1, :]
    bk = vec_ref[1:2, :]
    bv = vec_ref[2:3, :]
    bo = vec_ref[3:4, :]

    # --- input projections: Q alone, K/V fused into one (.., 2*size) matmul ---
    qp = jnp.dot(q2, wq_ref[...], preferred_element_type=f32) + bq       # (Bt*Nq, size)
    kvp = jnp.dot(kv2, wkv_ref[...], preferred_element_type=f32)         # (Bt*Nkv, 2*size)
    kp = kvp[:, :size] + bk        # softmax scale folded into W_k / b_k in the wrapper
    vp = kvp[:, size:] + bv

    q3 = qp.reshape(bt, nq, size)                                        # f32 (residual)
    q3b = q3.astype(bf16)
    k3b = kp.reshape(bt, nkv, size).astype(bf16)
    v3b = vp.reshape(bt, nkv, size).astype(bf16)

    # --- per-head attention, batched over Bt (no K transpose) ---
    head_outs = []
    for h in range(n_heads):                  # static, small unrolled loop
        sl = slice(h * hs, (h + 1) * hs)
        s = jnp.einsum("bqd,bkd->bqk", q3b[:, :, sl], k3b[:, :, sl],
                       preferred_element_type=f32)                       # (Bt, Nq, Nkv)
        s = s - jnp.max(s, axis=-1, keepdims=True)
        p = jnp.exp(s)
        p = p * pl.reciprocal(jnp.sum(p, axis=-1, keepdims=True), approx=True)
        head_outs.append(jnp.einsum("bqk,bkd->bqd", p.astype(bf16), v3b[:, :, sl],
                                    preferred_element_type=f32))
    # residual add hoisted out of the head loop: one full-width add
    attn = (q3 + jnp.concatenate(head_outs, axis=-1)).reshape(bt * nq, size)

    def _ln(x, g, b):
        mu = jnp.mean(x, axis=-1, keepdims=True)
        var = jnp.mean((x - mu) ** 2, axis=-1, keepdims=True)
        return (x - mu) * lax.rsqrt(var + eps) * g + b

    if layer_norm:
        attn = _ln(attn, vec_ref[4:5, :], vec_ref[5:6, :])

    # --- output MLP (ReLU) residual: one big bf16 matmul over Bt*Nq rows ---
    fc = jnp.dot(attn.astype(bf16), wo_ref[...], preferred_element_type=f32) + bo
    out = attn + jnp.maximum(fc, 0.0)

    if layer_norm:
        out = _ln(out, vec_ref[6:7, :], vec_ref[7:8, :])

    if flat_out:
        # dense 2-D store: (bt, Nq*size) -- dense in sublanes and lanes
        out_ref[...] = out.reshape(bt, nq * size).astype(out_ref.dtype)
    else:
        out_ref[...] = out.reshape(bt, nq, size).astype(out_ref.dtype)


# ----------------------------------------------------------------------------------------
# Wrapper helpers
# ----------------------------------------------------------------------------------------
def _default_target_steps():
    """1 grid step on single-TensorCore chips (v5e/v6e), even step count otherwise (v7x)."""
    try:
        kind = jax.devices()[0].device_kind.lower()
    except Exception:
        return 2
    for tag in ("v5e", "v5 lite", "v6e", "v6 lite"):
        if tag in kind:
            return 1
    return 2


def _pick_batch_tile(B, Nq, Nkv, size_Q, size_KV, size, target_steps, max_rows=512):
    """Largest batch tile that (a) divides B, (b) keeps rows-per-step <= max_rows (spill
    cap), (c) fits a conservative VMEM budget including the live intermediate set, and
    (d) when possible makes the step count a multiple of `target_steps` (load balance on
    2-TC chips, single step on 1-TC chips)."""
    budget = 24 * 1024 * 1024   # conservative; v7x has only 64 MiB physical VMEM / TC

    def vmem_est(bt):
        # double-buffered pipelined blocks (bf16 inputs, f32 output)
        blocks = 2 * (bt * Nq * size_Q * 2 + bt * Nkv * size_KV * 2 + bt * Nq * size * 4)
        # rough live-intermediate slab inside the body (qp/kvp/q3/k3b/v3b/attn/fc/out...)
        live = bt * Nq * size * 4 * 10 + bt * Nkv * size * 4 * 6
        return blocks + live

    divs = [d for d in range(1, B + 1) if B % d == 0]
    feasible = [d for d in divs if d * Nq <= max_rows and vmem_est(d) <= budget]
    if not feasible:
        feasible = [1]
    pref = [d for d in feasible if (B // d) % target_steps == 0]
    cands = pref if pref else feasible
    return max(cands)


# ----------------------------------------------------------------------------------------
# Wrapper
# ----------------------------------------------------------------------------------------
def mab_pallas(query, key_value, params, *, n_heads: int, layer_norm: bool = False,
               batch_tile=None):
    B, Nq, size_Q = query.shape
    _, Nkv, size_KV = key_value.shape
    size = params["wq"].shape[1]
    out_dtype = query.dtype                       # preserve caller dtype

    if batch_tile is None:
        batch_tile = _pick_batch_tile(B, Nq, Nkv, size_Q, size_KV, size,
                                      _default_target_steps())
    assert B % batch_tile == 0, "batch_tile must divide the batch size"
    bt = batch_tile
    nb = B // bt

    inv_scale = 1.0 / math.sqrt(size)             # PyTorch MAB scales by sqrt(size)
    bf16, f32 = jnp.bfloat16, jnp.float32

    # bf16 MXU operands; fold the softmax scale into the K half of the fused K|V weight.
    wq = params["wq"].astype(bf16)
    wkv = jnp.concatenate([params["wk"] * inv_scale, params["wv"]], axis=1).astype(bf16)
    wo = params["wo"].astype(bf16)

    ones = jnp.ones((1, size), f32)
    zeros = jnp.zeros((1, size), f32)
    vec = jnp.concatenate([
        params["bq"].astype(f32),
        (params["bk"] * inv_scale).astype(f32),
        params["bv"].astype(f32),
        params["bo"].astype(f32),
        params.get("g0", ones).astype(f32),
        params.get("be0", zeros).astype(f32),
        params.get("g1", ones).astype(f32),
        params.get("be1", zeros).astype(f32),
    ], axis=0)                                     # (8, size) f32

    # bf16 inputs: halves the HBM->VMEM DMA bytes, removes an in-kernel cast.
    q_in = query.astype(bf16)
    kv_in = key_value.astype(bf16)

    in_specs = [
        pl.BlockSpec((bt, Nq, size_Q), lambda b: (b, 0, 0)),
        pl.BlockSpec((bt, Nkv, size_KV), lambda b: (b, 0, 0)),
        pl.BlockSpec((size_Q, size), lambda b: (0, 0)),
        pl.BlockSpec((size_KV, 2 * size), lambda b: (0, 0)),
        pl.BlockSpec((size, size), lambda b: (0, 0)),
        pl.BlockSpec((8, size), lambda b: (0, 0)),
    ]
    args = (q_in, kv_in, wq, wkv, wo, vec)

    compiler_params = pltpu.CompilerParams(
        dimension_semantics=("parallel",),        # batch axis shards across TCs on v7x
        vmem_limit_bytes=32 * 1024 * 1024,        # explicit, safe on v5e/v6e/v7x
    )

    # Static output-layout choice (no runtime try/except): the 2-D (bt, Nq*size) slab is
    # valid only if its second-to-last block dim satisfies the (8,128)/full-dim rule.
    flat_out = (bt % 8 == 0) or (bt == B)

    if flat_out:
        out_shape = jax.ShapeDtypeStruct((B, Nq * size), out_dtype)
        out_spec = pl.BlockSpec((bt, Nq * size), lambda b: (b, 0))
    else:
        out_shape = jax.ShapeDtypeStruct((B, Nq, size), out_dtype)
        out_spec = pl.BlockSpec((bt, Nq, size), lambda b: (b, 0, 0))

    kernel = partial(_mab_kernel, n_heads=n_heads, layer_norm=layer_norm,
                     flat_out=flat_out)
    grid_spec = pltpu.PrefetchScalarGridSpec(
        num_scalar_prefetch=0,
        grid=(nb,),
        in_specs=in_specs,
        out_specs=out_spec,
    )
    out = pl.pallas_call(kernel, out_shape=out_shape, grid_spec=grid_spec,
                         compiler_params=compiler_params)(*args)
    return out.reshape(B, Nq, size)


# ----------------------------------------------------------------------------------------
# Pure-JAX reference mirroring the PyTorch forward exactly (for verification)
# ----------------------------------------------------------------------------------------
def mab_reference(query, key_value, params, *, n_heads: int, layer_norm: bool = False):
    size = params["wq"].shape[1]
    head_size = size // n_heads
    B = query.shape[0]
    eps = 1e-5

    q = query @ params["wq"] + params["bq"][0]
    k = key_value @ params["wk"] + params["bk"][0]
    v = key_value @ params["wv"] + params["bv"][0]

    split_heads = lambda x: jnp.concatenate(
        [x[:, :, h * head_size:(h + 1) * head_size] for h in range(n_heads)], axis=0)
    Q_, K_, V_ = split_heads(q), split_heads(k), split_heads(v)

    A = jax.nn.softmax(jnp.einsum("bqd,bkd->bqk", Q_, K_) / math.sqrt(size), axis=2)
    O_ = Q_ + jnp.einsum("bqk,bkd->bqd", A, V_)
    out = jnp.concatenate([O_[h * B:(h + 1) * B] for h in range(n_heads)], axis=2)

    def ln(x, g, b):
        mu = jnp.mean(x, axis=-1, keepdims=True)
        var = jnp.mean((x - mu) ** 2, axis=-1, keepdims=True)
        return (x - mu) / jnp.sqrt(var + eps) * g[0] + b[0]

    if layer_norm:
        out = ln(out, params["g0"], params["be0"])
    out = out + jax.nn.relu(out @ params["wo"] + params["bo"][0])
    if layer_norm:
        out = ln(out, params["g1"], params["be1"])
    return out


# ----------------------------------------------------------------------------------------
def make_params(key, size_Q, size_KV, size):
    ks = jax.random.split(key, 8)

    def lin(kw, kb, fan_in, fan_out):
        bound = 1.0 / math.sqrt(fan_in)
        w = jax.random.uniform(kw, (fan_in, fan_out), jnp.float32, -bound, bound)
        b = jax.random.uniform(kb, (1, fan_out), jnp.float32, -bound, bound)
        return w, b

    wq, bq = lin(ks[0], ks[1], size_Q, size)
    wk, bk = lin(ks[2], ks[3], size_KV, size)
    wv, bv = lin(ks[4], ks[5], size_KV, size)
    wo, bo = lin(ks[6], ks[7], size, size)
    return dict(wq=wq, bq=bq, wk=wk, bk=bk, wv=wv, bv=bv, wo=wo, bo=bo,
                g0=jnp.ones((1, size), jnp.float32), be0=jnp.zeros((1, size), jnp.float32),
                g1=jnp.ones((1, size), jnp.float32), be1=jnp.zeros((1, size), jnp.float32))


if __name__ == "__main__":
    B, Nq, Nkv = 4, 8, 8
    size_Q, size_KV, size, n_heads = 16, 16, 32, 4

    key = jax.random.PRNGKey(0)
    k_q, k_kv, k_p = jax.random.split(key, 3)
    query = jax.random.normal(k_q, (B, Nq, size_Q), jnp.float32)
    key_value = jax.random.normal(k_kv, (B, Nkv, size_KV), jnp.float32)
    params = make_params(k_p, size_Q, size_KV, size)

    ok = True
    for layer_norm in (False, True):
        out = mab_pallas(query, key_value, params, n_heads=n_heads, layer_norm=layer_norm)
        out = jax.block_until_ready(out)
        ref = mab_reference(query, key_value, params, n_heads=n_heads, layer_norm=layer_norm)
        # bf16 inputs/weights + approx reciprocal in the kernel -> compare loosely vs f32 ref.
        if not jnp.allclose(out, ref, atol=5e-2, rtol=5e-2):
            ok = False
            print("MISMATCH (layer_norm=%s): max abs err %e"
                  % (layer_norm, float(jnp.max(jnp.abs(out - ref)))))

    if ok:
        print("KERNEL_OK")
</pallas_src>

<mosaic_0001>
module attributes {stable_mosaic.version = 11 : i64} {
  func.func @_mab_kernel(%arg0: i32, %arg1: memref<2x8x16xbf16, #tpu.memory_space<vmem>>, %arg2: memref<2x8x16xbf16, #tpu.memory_space<vmem>>, %arg3: memref<16x32xbf16, #tpu.memory_space<vmem>>, %arg4: memref<16x64xbf16, #tpu.memory_space<vmem>>, %arg5: memref<32x32xbf16, #tpu.memory_space<vmem>>, %arg6: memref<8x32xf32, #tpu.memory_space<vmem>>, %arg7: memref<2x8x32xf32, #tpu.memory_space<vmem>>) attributes {dimension_semantics = [#tpu.dimension_semantics<parallel>], iteration_bounds = array<i64: 2>, scalar_prefetch = 0 : i64, scratch_operands = 0 : i64, tpu.core_type = #tpu.core_type<tc>, window_params = [{transform_indices = @transform_0, window_bounds = array<i64: 2, 8, 16>}, {transform_indices = @transform_1, window_bounds = array<i64: 2, 8, 16>}, {pipeline_mode = #tpu.pipeline_mode<synchronous>, transform_indices = @transform_2, window_bounds = array<i64: 16, 32>}, {pipeline_mode = #tpu.pipeline_mode<synchronous>, transform_indices = @transform_3, window_bounds = array<i64: 16, 64>}, {pipeline_mode = #tpu.pipeline_mode<synchronous>, transform_indices = @transform_4, window_bounds = array<i64: 32, 32>}, {pipeline_mode = #tpu.pipeline_mode<synchronous>, transform_indices = @transform_5, window_bounds = array<i64: 8, 32>}, {transform_indices = @transform_6, window_bounds = array<i64: 2, 8, 32>}]} {
    %c0 = arith.constant 0 : index
    %c0_0 = arith.constant 0 : index
    %c0_1 = arith.constant 0 : index
    %0 = vector.load %arg1[%c0, %c0_0, %c0_1] : memref<2x8x16xbf16, #tpu.memory_space<vmem>>, vector<2x8x16xbf16>
    %1 = vector.shape_cast %0 : vector<2x8x16xbf16> to vector<16x16xbf16>
    %c0_2 = arith.constant 0 : index
    %c0_3 = arith.constant 0 : index
    %c0_4 = arith.constant 0 : index
    %2 = vector.load %arg2[%c0_2, %c0_3, %c0_4] : memref<2x8x16xbf16, #tpu.memory_space<vmem>>, vector<2x8x16xbf16>
    %3 = vector.shape_cast %2 : vector<2x8x16xbf16> to vector<16x16xbf16>
    %c0_5 = arith.constant 0 : index
    %c0_6 = arith.constant 0 : index
    %4 = vector.load %arg6[%c0_5, %c0_6] : memref<8x32xf32, #tpu.memory_space<vmem>>, vector<1x32xf32>
    %c1 = arith.constant 1 : index
    %c0_7 = arith.constant 0 : index
    %5 = vector.load %arg6[%c1, %c0_7] : memref<8x32xf32, #tpu.memory_space<vmem>>, vector<1x32xf32>
    %c2 = arith.constant 2 : index
    %c0_8 = arith.constant 0 : index
    %6 = vector.load %arg6[%c2, %c0_8] : memref<8x32xf32, #tpu.memory_space<vmem>>, vector<1x32xf32>
    %c3 = arith.constant 3 : index
    %c0_9 = arith.constant 0 : index
    %7 = vector.load %arg6[%c3, %c0_9] : memref<8x32xf32, #tpu.memory_space<vmem>>, vector<1x32xf32>
    %c0_10 = arith.constant 0 : index
    %c0_11 = arith.constant 0 : index
    %8 = vector.load %arg3[%c0_10, %c0_11] : memref<16x32xbf16, #tpu.memory_space<vmem>>, vector<16x32xbf16>
    %cst = arith.constant dense<0.000000e+00> : vector<16x32xf32>
    %9 = tpu.matmul %1, %8, %cst {dimension_numbers = #tpu.dot_dimension_numbers<[1], [0], [0], [1], [0, 0, 1, 1], [], []>} : vector<16x16xbf16>, vector<16x32xbf16>, vector<16x32xf32> -> vector<16x32xf32>
    %10 = vector.broadcast %4 : vector<1x32xf32> to vector<16x32xf32>
    %11 = arith.addf %9, %10 : vector<16x32xf32>
    %c0_12 = arith.constant 0 : index
    %c0_13 = arith.constant 0 : index
    %12 = vector.load %arg4[%c0_12, %c0_13] : memref<16x64xbf16, #tpu.memory_space<vmem>>, vector<16x64xbf16>
    %cst_14 = arith.constant dense<0.000000e+00> : vector<16x64xf32>
    %13 = tpu.matmul %3, %12, %cst_14 {dimension_numbers = #tpu.dot_dimension_numbers<[1], [0], [0], [1], [0, 0, 1, 1], [], []>} : vector<16x16xbf16>, vector<16x64xbf16>, vector<16x64xf32> -> vector<16x64xf32>
    %14 = vector.extract_strided_slice %13 {offsets = [0, 0], sizes = [16, 32], strides = [1, 1]} : vector<16x64xf32> to vector<16x32xf32>
    %15 = vector.broadcast %5 : vector<1x32xf32> to vector<16x32xf32>
    %16 = arith.addf %14, %15 : vector<16x32xf32>
    %17 = vector.extract_strided_slice %13 {offsets = [0, 32], sizes = [16, 32], strides = [1, 1]} : vector<16x64xf32> to vector<16x32xf32>
    %18 = vector.broadcast %6 : vector<1x32xf32> to vector<16x32xf32>
    %19 = arith.addf %17, %18 : vector<16x32xf32>
    %20 = vector.shape_cast %11 : vector<16x32xf32> to vector<2x8x32xf32>
    %21 = arith.truncf %20 : vector<2x8x32xf32> to vector<2x8x32xbf16>
    %22 = vector.shape_cast %16 : vector<16x32xf32> to vector<2x8x32xf32>
    %23 = arith.truncf %22 : vector<2x8x32xf32> to vector<2x8x32xbf16>
    %24 = vector.shape_cast %19 : vector<16x32xf32> to vector<2x8x32xf32>
    %25 = arith.truncf %24 : vector<2x8x32xf32> to vector<2x8x32xbf16>
    %26 = vector.extract_strided_slice %21 {offsets = [0, 0, 0], sizes = [2, 8, 8], strides = [1, 1, 1]} : vector<2x8x32xbf16> to vector<2x8x8xbf16>
    %27 = vector.extract_strided_slice %23 {offsets = [0, 0, 0], sizes = [2, 8, 8], strides = [1, 1, 1]} : vector<2x8x32xbf16> to vector<2x8x8xbf16>
    "tpu.trace_start"() <{level = 10 : i32, message = "bqd,bkd->bqk"}> : () -> ()
    %cst_15 = arith.constant dense<0.000000e+00> : vector<2x8x8xf32>
    %28 = tpu.matmul %26, %27, %cst_15 {dimension_numbers = #tpu.dot_dimension_numbers<[2], [2], [1], [1], [0, 0, 0, 1, 1, 1], [0], [0]>} : vector<2x8x8xbf16>, vector<2x8x8xbf16>, vector<2x8x8xf32> -> vector<2x8x8xf32>
    "tpu.trace_stop"() : () -> ()
    %cst_16 = arith.constant dense<0xFF800000> : vector<2x8xf32>
    %29 = vector.multi_reduction <maximumf>, %28, %cst_16 [2] : vector<2x8x8xf32> to vector<2x8xf32>
    %30 = vector.shape_cast %29 : vector<2x8xf32> to vector<2x8x1xf32>
    %31 = vector.broadcast %30 : vector<2x8x1xf32> to vector<2x8x8xf32>
    %32 = arith.subf %28, %31 : vector<2x8x8xf32>
    %33 = math.exp %32 : vector<2x8x8xf32>
    %cst_17 = arith.constant dense<0.000000e+00> : vector<2x8xf32>
    %34 = vector.multi_reduction <add>, %33, %cst_17 [2] : vector<2x8x8xf32> to vector<2x8xf32>
    %35 = vector.shape_cast %34 : vector<2x8xf32> to vector<2x8x1xf32>
    %36 = tpu.reciprocal %35 {approx = true} : vector<2x8x1xf32> -> vector<2x8x1xf32>
    %37 = vector.broadcast %36 : vector<2x8x1xf32> to vector<2x8x8xf32>
    %38 = arith.mulf %33, %37 : vector<2x8x8xf32>
    %39 = arith.truncf %38 : vector<2x8x8xf32> to vector<2x8x8xbf16>
    %40 = vector.extract_strided_slice %25 {offsets = [0, 0, 0], sizes = [2, 8, 8], strides = [1, 1, 1]} : vector<2x8x32xbf16> to vector<2x8x8xbf16>
    "tpu.trace_start"() <{level = 10 : i32, message = "bqk,bkd->bqd"}> : () -> ()
    %cst_18 = arith.constant dense<0.000000e+00> : vector<2x8x8xf32>
    %41 = tpu.matmul %39, %40, %cst_18 {dimension_numbers = #tpu.dot_dimension_numbers<[2], [1], [1], [2], [0, 0, 0, 1, 1, 2], [0], [0]>} : vector<2x8x8xbf16>, vector<2x8x8xbf16>, vector<2x8x8xf32> -> vector<2x8x8xf32>
    "tpu.trace_stop"() : () -> ()
    %42 = vector.extract_strided_slice %21 {offsets = [0, 0, 8], sizes = [2, 8, 8], strides = [1, 1, 1]} : vector<2x8x32xbf16> to vector<2x8x8xbf16>
    %43 = vector.extract_strided_slice %23 {offsets = [0, 0, 8], sizes = [2, 8, 8], strides = [1, 1, 1]} : vector<2x8x32xbf16> to vector<2x8x8xbf16>
    "tpu.trace_start"() <{level = 10 : i32, message = "bqd,bkd->bqk"}> : () -> ()
    %cst_19 = arith.constant dense<0.000000e+00> : vector<2x8x8xf32>
    %44 = tpu.matmul %42, %43, %cst_19 {dimension_numbers = #tpu.dot_dimension_numbers<[2], [2], [1], [1], [0, 0, 0, 1, 1, 1], [0], [0]>} : vector<2x8x8xbf16>, vector<2x8x8xbf16>, vector<2x8x8xf32> -> vector<2x8x8xf32>
    "tpu.trace_stop"() : () -> ()
    %cst_20 = arith.constant dense<0xFF800000> : vector<2x8xf32>
    %45 = vector.multi_reduction <maximumf>, %44, %cst_20 [2] : vector<2x8x8xf32> to vector<2x8xf32>
    %46 = vector.shape_cast %45 : vector<2x8xf32> to vector<2x8x1xf32>
    %47 = vector.broadcast %46 : vector<2x8x1xf32> to vector<2x8x8xf32>
    %48 = arith.subf %44, %47 : vector<2x8x8xf32>
    %49 = math.exp %48 : vector<2x8x8xf32>
    %cst_21 = arith.constant dense<0.000000e+00> : vector<2x8xf32>
    %50 = vector.multi_reduction <add>, %49, %cst_21 [2] : vector<2x8x8xf32> to vector<2x8xf32>
    %51 = vector.shape_cast %50 : vector<2x8xf32> to vector<2x8x1xf32>
    %52 = tpu.reciprocal %51 {approx = true} : vector<2x8x1xf32> -> vector<2x8x1xf32>
    %53 = vector.broadcast %52 : vector<2x8x1xf32> to vector<2x8x8xf32>
    %54 = arith.mulf %49, %53 : vector<2x8x8xf32>
    %55 = arith.truncf %54 : vector<2x8x8xf32> to vector<2x8x8xbf16>
    %56 = vector.extract_strided_slice %25 {offsets = [0, 0, 8], sizes = [2, 8, 8], strides = [1, 1, 1]} : vector<2x8x32xbf16> to vector<2x8x8xbf16>
    "tpu.trace_start"() <{level = 10 : i32, message = "bqk,bkd->bqd"}> : () -> ()
    %cst_22 = arith.constant dense<0.000000e+00> : vector<2x8x8xf32>
    %57 = tpu.matmul %55, %56, %cst_22 {dimension_numbers = #tpu.dot_dimension_numbers<[2], [1], [1], [2], [0, 0, 0, 1, 1, 2], [0], [0]>} : vector<2x8x8xbf16>, vector<2x8x8xbf16>, vector<2x8x8xf32> -> vector<2x8x8xf32>
    "tpu.trace_stop"() : () -> ()
    %58 = vector.extract_strided_slice %21 {offsets = [0, 0, 16], sizes = [2, 8, 8], strides = [1, 1, 1]} : vector<2x8x32xbf16> to vector<2x8x8xbf16>
    %59 = vector.extract_strided_slice %23 {offsets = [0, 0, 16], sizes = [2, 8, 8], strides = [1, 1, 1]} : vector<2x8x32xbf16> to vector<2x8x8xbf16>
    "tpu.trace_start"() <{level = 10 : i32, message = "bqd,bkd->bqk"}> : () -> ()
    %cst_23 = arith.constant dense<0.000000e+00> : vector<2x8x8xf32>
    %60 = tpu.matmul %58, %59, %cst_23 {dimension_numbers = #tpu.dot_dimension_numbers<[2], [2], [1], [1], [0, 0, 0, 1, 1, 1], [0], [0]>} : vector<2x8x8xbf16>, vector<2x8x8xbf16>, vector<2x8x8xf32> -> vector<2x8x8xf32>
    "tpu.trace_stop"() : () -> ()
    %cst_24 = arith.constant dense<0xFF800000> : vector<2x8xf32>
    %61 = vector.multi_reduction <maximumf>, %60, %cst_24 [2] : vector<2x8x8xf32> to vector<2x8xf32>
    %62 = vector.shape_cast %61 : vector<2x8xf32> to vector<2x8x1xf32>
    %63 = vector.broadcast %62 : vector<2x8x1xf32> to vector<2x8x8xf32>
    %64 = arith.subf %60, %63 : vector<2x8x8xf32>
    %65 = math.exp %64 : vector<2x8x8xf32>
    %cst_25 = arith.constant dense<0.000000e+00> : vector<2x8xf32>
    %66 = vector.multi_reduction <add>, %65, %cst_25 [2] : vector<2x8x8xf32> to vector<2x8xf32>
    %67 = vector.shape_cast %66 : vector<2x8xf32> to vector<2x8x1xf32>
    %68 = tpu.reciprocal %67 {approx = true} : vector<2x8x1xf32> -> vector<2x8x1xf32>
    %69 = vector.broadcast %68 : vector<2x8x1xf32> to vector<2x8x8xf32>
    %70 = arith.mulf %65, %69 : vector<2x8x8xf32>
    %71 = arith.truncf %70 : vector<2x8x8xf32> to vector<2x8x8xbf16>
    %72 = vector.extract_strided_slice %25 {offsets = [0, 0, 16], sizes = [2, 8, 8], strides = [1, 1, 1]} : vector<2x8x32xbf16> to vector<2x8x8xbf16>
    "tpu.trace_start"() <{level = 10 : i32, message = "bqk,bkd->bqd"}> : () -> ()
    %cst_26 = arith.constant dense<0.000000e+00> : vector<2x8x8xf32>
    %73 = tpu.matmul %71, %72, %cst_26 {dimension_numbers = #tpu.dot_dimension_numbers<[2], [1], [1], [2], [0, 0, 0, 1, 1, 2], [0], [0]>} : vector<2x8x8xbf16>, vector<2x8x8xbf16>, vector<2x8x8xf32> -> vector<2x8x8xf32>
    "tpu.trace_stop"() : () -> ()
    %74 = vector.extract_strided_slice %21 {offsets = [0, 0, 24], sizes = [2, 8, 8], strides = [1, 1, 1]} : vector<2x8x32xbf16> to vector<2x8x8xbf16>
    %75 = vector.extract_strided_slice %23 {offsets = [0, 0, 24], sizes = [2, 8, 8], strides = [1, 1, 1]} : vector<2x8x32xbf16> to vector<2x8x8xbf16>
    "tpu.trace_start"() <{level = 10 : i32, message = "bqd,bkd->bqk"}> : () -> ()
    %cst_27 = arith.constant dense<0.000000e+00> : vector<2x8x8xf32>
    %76 = tpu.matmul %74, %75, %cst_27 {dimension_numbers = #tpu.dot_dimension_numbers<[2], [2], [1], [1], [0, 0, 0, 1, 1, 1], [0], [0]>} : vector<2x8x8xbf16>, vector<2x8x8xbf16>, vector<2x8x8xf32> -> vector<2x8x8xf32>
    "tpu.trace_stop"() : () -> ()
    %cst_28 = arith.constant dense<0xFF800000> : vector<2x8xf32>
    %77 = vector.multi_reduction <maximumf>, %76, %cst_28 [2] : vector<2x8x8xf32> to vector<2x8xf32>
    %78 = vector.shape_cast %77 : vector<2x8xf32> to vector<2x8x1xf32>
    %79 = vector.broadcast %78 : vector<2x8x1xf32> to vector<2x8x8xf32>
    %80 = arith.subf %76, %79 : vector<2x8x8xf32>
    %81 = math.exp %80 : vector<2x8x8xf32>
    %cst_29 = arith.constant dense<0.000000e+00> : vector<2x8xf32>
    %82 = vector.multi_reduction <add>, %81, %cst_29 [2] : vector<2x8x8xf32> to vector<2x8xf32>
    %83 = vector.shape_cast %82 : vector<2x8xf32> to vector<2x8x1xf32>
    %84 = tpu.reciprocal %83 {approx = true} : vector<2x8x1xf32> -> vector<2x8x1xf32>
    %85 = vector.broadcast %84 : vector<2x8x1xf32> to vector<2x8x8xf32>
    %86 = arith.mulf %81, %85 : vector<2x8x8xf32>
    %87 = arith.truncf %86 : vector<2x8x8xf32> to vector<2x8x8xbf16>
    %88 = vector.extract_strided_slice %25 {offsets = [0, 0, 24], sizes = [2, 8, 8], strides = [1, 1, 1]} : vector<2x8x32xbf16> to vector<2x8x8xbf16>
    "tpu.trace_start"() <{level = 10 : i32, message = "bqk,bkd->bqd"}> : () -> ()
    %cst_30 = arith.constant dense<0.000000e+00> : vector<2x8x8xf32>
    %89 = tpu.matmul %87, %88, %cst_30 {dimension_numbers = #tpu.dot_dimension_numbers<[2], [1], [1], [2], [0, 0, 0, 1, 1, 2], [0], [0]>} : vector<2x8x8xbf16>, vector<2x8x8xbf16>, vector<2x8x8xf32> -> vector<2x8x8xf32>
    "tpu.trace_stop"() : () -> ()
    %90 = tpu.concatenate %41, %57, %73, %89 in 2 : vector<2x8x8xf32>, vector<2x8x8xf32>, vector<2x8x8xf32>, vector<2x8x8xf32> -> vector<2x8x32xf32>
    %91 = arith.addf %20, %90 : vector<2x8x32xf32>
    %92 = vector.shape_cast %91 : vector<2x8x32xf32> to vector<16x32xf32>
    %93 = arith.truncf %92 : vector<16x32xf32> to vector<16x32xbf16>
    %c0_31 = arith.constant 0 : index
    %c0_32 = arith.constant 0 : index
    %94 = vector.load %arg5[%c0_31, %c0_32] : memref<32x32xbf16, #tpu.memory_space<vmem>>, vector<32x32xbf16>
    %cst_33 = arith.constant dense<0.000000e+00> : vector<16x32xf32>
    %95 = tpu.matmul %93, %94, %cst_33 {dimension_numbers = #tpu.dot_dimension_numbers<[1], [0], [0], [1], [0, 0, 1, 1], [], []>} : vector<16x32xbf16>, vector<32x32xbf16>, vector<16x32xf32> -> vector<16x32xf32>
    %96 = vector.broadcast %7 : vector<1x32xf32> to vector<16x32xf32>
    %97 = arith.addf %95, %96 : vector<16x32xf32>
    %cst_34 = arith.constant 0.000000e+00 : f32
    %98 = vector.broadcast %cst_34 : f32 to vector<16x32xf32>
    %99 = arith.maximumf %97, %98 : vector<16x32xf32>
    %100 = arith.addf %92, %99 : vector<16x32xf32>
    %101 = vector.shape_cast %100 : vector<16x32xf32> to vector<2x8x32xf32>
    %c0_35 = arith.constant 0 : index
    %c0_36 = arith.constant 0 : index
    %c0_37 = arith.constant 0 : index
    %102 = vector.load %arg7[%c0_35, %c0_36, %c0_37] : memref<2x8x32xf32, #tpu.memory_space<vmem>>, vector<2x8x32xf32>
    tpu.vector_store %arg7[%c0_35, %c0_36, %c0_37], %101 {strides = array<i32>} : memref<2x8x32xf32, #tpu.memory_space<vmem>>, vector<2x8x32xf32>,
    return
  }
  func.func @transform_0(%arg0: i32) -> (i32, i32, i32) {
    %c0_i32 = arith.constant 0 : i32
    %c0_i32_0 = arith.constant 0 : i32
    %c0_i32_1 = arith.constant 0 : i32
    return %arg0, %c0_i32, %c0_i32_0 : i32, i32, i32
  }
  func.func @transform_1(%arg0: i32) -> (i32, i32, i32) {
    %c0_i32 = arith.constant 0 : i32
    %c0_i32_0 = arith.constant 0 : i32
    %c0_i32_1 = arith.constant 0 : i32
    return %arg0, %c0_i32, %c0_i32_0 : i32, i32, i32
  }
  func.func @transform_2(%arg0: i32) -> (i32, i32) {
    %c0_i32 = arith.constant 0 : i32
    %c0_i32_0 = arith.constant 0 : i32
    %c0_i32_1 = arith.constant 0 : i32
    return %c0_i32, %c0_i32_0 : i32, i32
  }
  func.func @transform_3(%arg0: i32) -> (i32, i32) {
    %c0_i32 = arith.constant 0 : i32
    %c0_i32_0 = arith.constant 0 : i32
    %c0_i32_1 = arith.constant 0 : i32
    return %c0_i32, %c0_i32_0 : i32, i32
  }
  func.func @transform_4(%arg0: i32) -> (i32, i32) {
    %c0_i32 = arith.constant 0 : i32
    %c0_i32_0 = arith.constant 0 : i32
    %c0_i32_1 = arith.constant 0 : i32
    return %c0_i32, %c0_i32_0 : i32, i32
  }
  func.func @transform_5(%arg0: i32) -> (i32, i32) {
    %c0_i32 = arith.constant 0 : i32
    %c0_i32_0 = arith.constant 0 : i32
    %c0_i32_1 = arith.constant 0 : i32
    return %c0_i32, %c0_i32_0 : i32, i32
  }
  func.func @transform_6(%arg0: i32) -> (i32, i32, i32) {
    %c0_i32 = arith.constant 0 : i32
    %c0_i32_0 = arith.constant 0 : i32
    %c0_i32_1 = arith.constant 0 : i32
    return %arg0, %c0_i32, %c0_i32_0 : i32, i32, i32
  }
}

</mosaic_0001>

<llo_original>
// kernel: tpu_custom_call.1
$region0: #{tpu_custom_call.1}
  #allocation0 [shape = 'u32[]', space=smem, size = 0x4, offset = 0x4, fixed_abs, tag = 'smem constant byte address 0x4 - core index']
  #allocation1 [shape = 'u32[144,128]{1,0:T(1,128)}', space=vmem, size = 0x12000, scoped, tag = 'internal scratch']
  %s0 = inlined_call_operand.hbm [shape: bf16[4,8,16], index: 0, kind: input, shape index: {}]
  %s1 = inlined_call_operand.hbm [shape: bf16[4,8,16], index: 1, kind: input, shape index: {}]
  %s2 = inlined_call_operand.hbm [shape: bf16[16,32], index: 2, kind: input, shape index: {}]
  %s3 = inlined_call_operand.vmem [shape: bf16[16,64], index: 3, kind: input, shape index: {}]
  %s4 = inlined_call_operand.hbm [shape: bf16[32,32], index: 4, kind: input, shape index: {}]
  %s5 = inlined_call_operand.vmem [shape: f32[8,32], index: 5, kind: input, shape index: {}]
  %s6 = inlined_call_operand.hbm [shape: f32[4,8,32], index: 6, kind: output, shape index: {}]
  %s7 = sld [smem:[#allocation0]]
  $region73: #{tpu_custom_call.1} parent=0
    _
  %s9 = ssub.s32 1, %s7
  %s10 = scalar_select 0, %s9, %s7
  $region1: #{tpu_custom_call.1} parent=0
    #allocation2 [shape = 'u8[8192]{0}', space=vmem, size = 0x2000, scoped, tag = 'input window, operand 0']
    #allocation3 [shape = 's32[2]{0}', space=sflag, size = 0x8, scoped, tag = 'scoped memory for tpu_custom_call.1']
    #allocation4 [shape = 's32[2]{0}', space=sflag, size = 0x8, scoped, tag = 'scoped memory for tpu_custom_call.1']
    #allocation5 [shape = 'u8[8192]{0}', space=vmem, size = 0x2000, scoped, tag = 'input window, operand 1']
    #allocation6 [shape = 's32[2]{0}', space=sflag, size = 0x8, scoped, tag = 'scoped memory for tpu_custom_call.1']
    #allocation7 [shape = 'u8[4096]{0}', space=vmem, size = 0x1000, scoped, tag = 'input window, operand 2, single buffered']
    #allocation8 [shape = 'u8[8192]{0}', space=vmem, size = 0x2000, scoped, tag = 'input window, operand 4, single buffered']
    #allocation9 [shape = 's32[1]{0}', space=sflag, size = 0x4, scoped, tag = 'scoped memory for tpu_custom_call.1']
    #allocation10 [shape = 'u8[16384]{0}', space=vmem, size = 0x4000, scoped, tag = 'output window, operand 0']
    %11 = vsyncpa [#allocation3], 0
    %s12 = scalar_lea.sflag [#allocation3], 1
    %13 = vsyncpa %s12, 0
    %14 = vsyncpa [#allocation6], 0
    %s15 = scalar_lea.sflag [#allocation6], 1
    %16 = vsyncpa %s15, 0
    %17 = vsyncpa [#allocation9], 0
    %18 = vsyncpa [#allocation4], 0
    %s19 = scalar_lea.sflag [#allocation4], 1
    %20 = vsyncpa %s19, 0
    loop: start=0, step=1, limit=4
    $region2: #{tpu_custom_call.1} parent=1 // loop_pre_header
      _
    $region3: #{tpu_custom_call.1} parent=1 // loop_header
      %s22 = sphi 0, %s26
      %p23 = scmp.ge.s32.totalorder %s22, 4
      %s32 = sphi 0, %s34
      %s35 = sphi 0, %s32
      %s36 = sphi 0, %s35
      %s52 = sphi 0, %s36
      %s58 = sphi 0, %s60
      %s61 = sphi 0, %s58
      %s62 = sphi 0, %s61
      %s78 = sphi 0, %s62
      %s82 = sphi 0, %s82
      %s84 = sphi 0, %s82
      %s85 = sphi 0, %s84
      %s99 = sphi 0, %s85
      %s103 = sphi 0, %s103
      %s105 = sphi 0, %s103
      %s106 = sphi 0, %s105
      %s120 = sphi 0, %s106
      %s124 = sphi 0, %s124
      %s126 = sphi 0, %s124
      %s127 = sphi 0, %s126
      %s141 = sphi 0, %s127
      %s145 = sphi 0, %s145
      %s147 = sphi 0, %s145
      %s148 = sphi 0, %s147
      %s162 = sphi 0, %s148
      %s168 = sphi 0, %s170
      %s171 = sphi 0, %s168
      %s172 = sphi 0, %s171
      %s188 = sphi 0, %s172
    $region4: #{tpu_custom_call.1} parent=1 // loop_header_branch
      %25 = sbr.rel (%p23) target = $region8
    $region5: #{tpu_custom_call.1} parent=1 // loop_body
      %s27 = ssub.s32 %s22, 1
      %s28 = ssub.s32 %s22, 2
      %s29 = sadd.s32 %s22, 1
      %s30 = ssub.s32 %s22, %s29
      %p31 = scmp.eq.s32.totalorder %s30, 0
      %s33 = sadd.s32 %s32, 1
      %s34 = scalar_select %p31, %s32, %s33
      %p37 = pneg %p31
      %p38 = scmp.eq.s32.totalorder %s22, 1
      %p39 = por %p37, %p38
      %p40 = scmp.ne.s32.totalorder %s32, %s35
      %p41 = scmp.eq.s32.totalorder %s22, 0
      %p42 = por %p40, %p41
      %p43 = scmp.ne.s32.totalorder %s32, %s35
      %p44 = scmp.eq.s32.totalorder %s27, 1
      %p45 = por %p43, %p44
      %p46 = scmp.ne.s32.totalorder %s35, %s36
      %p47 = scmp.eq.s32.totalorder %s27, 0
      %p48 = por %p46, %p47
      %p49 = scmp.ne.s32.totalorder %s35, %s36
      %p50 = scmp.eq.s32.totalorder %s28, 1
      %p51 = por %p49, %p50
      %p53 = scmp.ne.s32.totalorder %s36, %s52
      %p54 = scmp.eq.s32.totalorder %s28, 0
      %p55 = por %p53, %p54
      %s56 = ssub.s32 %s22, %s29
      %p57 = scmp.eq.s32.totalorder %s56, 0
      %s59 = sadd.s32 %s58, 1
      %s60 = scalar_select %p57, %s58, %s59
      %p63 = pneg %p57
      %p64 = scmp.eq.s32.totalorder %s22, 1
      %p65 = por %p63, %p64
      %p66 = scmp.ne.s32.totalorder %s58, %s61
      %p67 = scmp.eq.s32.totalorder %s22, 0
      %p68 = por %p66, %p67
      %p69 = scmp.ne.s32.totalorder %s58, %s61
      %p70 = scmp.eq.s32.totalorder %s27, 1
      %p71 = por %p69, %p70
      %p72 = scmp.ne.s32.totalorder %s61, %s62
      %p73 = scmp.eq.s32.totalorder %s27, 0
      %p74 = por %p72, %p73
      %p75 = scmp.ne.s32.totalorder %s61, %s62
      %p76 = scmp.eq.s32.totalorder %s28, 1
      %p77 = por %p75, %p76
      %p79 = scmp.ne.s32.totalorder %s62, %s78
      %p80 = scmp.eq.s32.totalorder %s28, 0
      %p81 = por %p79, %p80
      %s83 = sadd.s32 %s82, 1
      %p86 = scmp.eq.s32.totalorder %s22, 1
      %p87 = scmp.ne.s32.totalorder %s82, %s84
      %p88 = scmp.eq.s32.totalorder %s22, 0
      %p89 = por %p87, %p88
      %p90 = scmp.ne.s32.totalorder %s82, %s84
      %p91 = scmp.eq.s32.totalorder %s27, 1
      %p92 = por %p90, %p91
      %p93 = scmp.ne.s32.totalorder %s84, %s85
      %p94 = scmp.eq.s32.totalorder %s27, 0
      %p95 = por %p93, %p94
      %p96 = scmp.ne.s32.totalorder %s84, %s85
      %p97 = scmp.eq.s32.totalorder %s28, 1
      %p98 = por %p96, %p97
      %p100 = scmp.ne.s32.totalorder %s85, %s99
      %p101 = scmp.eq.s32.totalorder %s28, 0
      %p102 = por %p100, %p101
      %s104 = sadd.s32 %s103, 1
      %p107 = scmp.eq.s32.totalorder %s22, 1
      %p108 = scmp.ne.s32.totalorder %s103, %s105
      %p109 = scmp.eq.s32.totalorder %s22, 0
      %p110 = por %p108, %p109
      %p111 = scmp.ne.s32.totalorder %s103, %s105
      %p112 = scmp.eq.s32.totalorder %s27, 1
      %p113 = por %p111, %p112
      %p114 = scmp.ne.s32.totalorder %s105, %s106
      %p115 = scmp.eq.s32.totalorder %s27, 0
      %p116 = por %p114, %p115
      %p117 = scmp.ne.s32.totalorder %s105, %s106
      %p118 = scmp.eq.s32.totalorder %s28, 1
      %p119 = por %p117, %p118
      %p121 = scmp.ne.s32.totalorder %s106, %s120
      %p122 = scmp.eq.s32.totalorder %s28, 0
      %p123 = por %p121, %p122
      %s125 = sadd.s32 %s124, 1
      %p128 = scmp.eq.s32.totalorder %s22, 1
      %p129 = scmp.ne.s32.totalorder %s124, %s126
      %p130 = scmp.eq.s32.totalorder %s22, 0
      %p131 = por %p129, %p130
      %p132 = scmp.ne.s32.totalorder %s124, %s126
      %p133 = scmp.eq.s32.totalorder %s27, 1
      %p134 = por %p132, %p133
      %p135 = scmp.ne.s32.totalorder %s126, %s127
      %p136 = scmp.eq.s32.totalorder %s27, 0
      %p137 = por %p135, %p136
      %p138 = scmp.ne.s32.totalorder %s126, %s127
      %p139 = scmp.eq.s32.totalorder %s28, 1
      %p140 = por %p138, %p139
      %p142 = scmp.ne.s32.totalorder %s127, %s141
      %p143 = scmp.eq.s32.totalorder %s28, 0
      %p144 = por %p142, %p143
      %s146 = sadd.s32 %s145, 1
      %p149 = scmp.eq.s32.totalorder %s22, 1
      %p150 = scmp.ne.s32.totalorder %s145, %s147
      %p151 = scmp.eq.s32.totalorder %s22, 0
      %p152 = por %p150, %p151
      %p153 = scmp.ne.s32.totalorder %s145, %s147
      %p154 = scmp.eq.s32.totalorder %s27, 1
      %p155 = por %p153, %p154
      %p156 = scmp.ne.s32.totalorder %s147, %s148
      %p157 = scmp.eq.s32.totalorder %s27, 0
      %p158 = por %p156, %p157
      %p159 = scmp.ne.s32.totalorder %s147, %s148
      %p160 = scmp.eq.s32.totalorder %s28, 1
      %p161 = por %p159, %p160
      %p163 = scmp.ne.s32.totalorder %s148, %s162
      %p164 = scmp.eq.s32.totalorder %s28, 0
      %p165 = por %p163, %p164
      %s166 = ssub.s32 %s22, %s29
      %p167 = scmp.eq.s32.totalorder %s166, 0
      %s169 = sadd.s32 %s168, 1
      %s170 = scalar_select %p167, %s168, %s169
      %p173 = pneg %p167
      %p174 = scmp.eq.s32.totalorder %s22, 1
      %p175 = por %p173, %p174
      %p176 = scmp.ne.s32.totalorder %s168, %s171
      %p177 = scmp.eq.s32.totalorder %s22, 0
      %p178 = por %p176, %p177
      %p179 = scmp.ne.s32.totalorder %s168, %s171
      %p180 = scmp.eq.s32.totalorder %s27, 1
      %p181 = por %p179, %p180
      %p182 = scmp.ne.s32.totalorder %s171, %s172
      %p183 = scmp.eq.s32.totalorder %s27, 0
      %p184 = por %p182, %p183
      %p185 = scmp.ne.s32.totalorder %s171, %s172
      %p186 = scmp.eq.s32.totalorder %s28, 1
      %p187 = por %p185, %p186
      %p189 = scmp.ne.s32.totalorder %s172, %s188
      %p190 = scmp.eq.s32.totalorder %s28, 0
      %p191 = por %p189, %p190
      %p192 = scmp.le.s32.totalorder 1, %s22
      %p193 = scmp.lt.s32.totalorder %s22, 3
      %p194 = pnand %p192, %p193
      %p195 = pneg %p194
      // Predicated region
      $region9: #{tpu_custom_call.1} parent=5 // pred_check
        _
      $region10: #{tpu_custom_call.1} parent=5 // pred_check_branch
        %197 = sbr.rel (%p194) target = $region12
      $region11: #{tpu_custom_call.1} parent=5 // pred_region
        %s198 = ssub.s32 %s22, 1
        // Predicated region
        $region13: #{tpu_custom_call.1} parent=11 // pred_check
          %p199 = pneg %p95
        $region14: #{tpu_custom_call.1} parent=11 // pred_check_branch
          %201 = sbr.rel (%p199) target = $region16
        $region15: #{tpu_custom_call.1} parent=11 // pred_region
          %s203 = ssub.s32 128, 128
          %204 = vsyncadd [#allocation6], %s203
          %s205 = sshll.u32 [#allocation7], 4
          %s206 = int_to_ptr.vmem [resolvable:$true] %s205
          %211 = dma.hbm_to_vmem [thread:$0]  %s2, 128, %s206, [#allocation6], 64, 64, 4
        $region16: #{tpu_custom_call.1} parent=11 // pred_fallthru
          _
        // Predicated region
        $region17: #{tpu_custom_call.1} parent=11 // pred_check
          %p212 = pneg %p116
        $region18: #{tpu_custom_call.1} parent=11 // pred_check_branch
          %214 = sbr.rel (%p212) target = $region20
        $region19: #{tpu_custom_call.1} parent=11 // pred_region
          _
        $region20: #{tpu_custom_call.1} parent=11 // pred_fallthru
          _
        // Predicated region
        $region21: #{tpu_custom_call.1} parent=11 // pred_check
          %p215 = pneg %p137
        $region22: #{tpu_custom_call.1} parent=11 // pred_check_branch
          %217 = sbr.rel (%p215) target = $region24
        $region23: #{tpu_custom_call.1} parent=11 // pred_region
          %s219 = ssub.s32 256, 256
          %220 = vsyncadd [#allocation9], %s219
          %s221 = sshll.u32 [#allocation8], 4
          %s222 = int_to_ptr.vmem [resolvable:$true] %s221
          %227 = dma.hbm_to_vmem [thread:$0]  %s4, 256, %s222, [#allocation9], 64, 64, 4
        $region24: #{tpu_custom_call.1} parent=11 // pred_fallthru
          _
        // Predicated region
        $region25: #{tpu_custom_call.1} parent=11 // pred_check
          %p228 = pneg %p158
        $region26: #{tpu_custom_call.1} parent=11 // pred_check_branch
          %230 = sbr.rel (%p228) target = $region28
        $region27: #{tpu_custom_call.1} parent=11 // pred_region
          _
        $region28: #{tpu_custom_call.1} parent=11 // pred_fallthru
          _
      $region12: #{tpu_custom_call.1} parent=5 // pred_fallthru
        _
      %p231 = scmp.lt.s32.totalorder %s22, 2
      // Predicated region
      $region29: #{tpu_custom_call.1} parent=5 // pred_check
        %p232 = pneg %p231
      $region30: #{tpu_custom_call.1} parent=5 // pred_check_branch
        %234 = sbr.rel (%p232) target = $region32
      $region31: #{tpu_custom_call.1} parent=5 // pred_region
        // Predicated region
        $region33: #{tpu_custom_call.1} parent=31 // pred_check
          %p235 = pneg %p42
        $region34: #{tpu_custom_call.1} parent=31 // pred_check_branch
          %237 = sbr.rel (%p235) target = $region36
        $region35: #{tpu_custom_call.1} parent=31 // pred_region
          %s238 = sand.u32 %s32, 1
          %s239 = scalar_lea.sflag [#allocation3], %s238
          %s240 = sand.u32 %s32, 1
          %s241 = smul.addr %s240, 8
          %s242 = scalar_lea.vmem [#allocation2], %s241
          %s243 = smul.u32 2, %s22
          %s245 = ssub.s32 128, 128
          %246 = vsyncadd %s239, %s245
          %s247 = smul.addr %s243, 64
          %s248 = scalar_lea.hbm %s0, %s247
          %s249 = sshll.u32 %s242, 4
          %s250 = int_to_ptr.vmem [resolvable:$true] %s249
          %255 = dma.hbm_to_vmem [thread:$0]  %s248, 128, %s250, %s239, 64, 64, 4
        $region36: #{tpu_custom_call.1} parent=31 // pred_fallthru
          _
        // Predicated region
        $region37: #{tpu_custom_call.1} parent=31 // pred_check
          %p256 = pneg %p68
        $region38: #{tpu_custom_call.1} parent=31 // pred_check_branch
          %258 = sbr.rel (%p256) target = $region40
        $region39: #{tpu_custom_call.1} parent=31 // pred_region
          %s259 = sand.u32 %s22, 1
          %s260 = scalar_lea.sflag [#allocation6], %s259
          %s261 = sand.u32 %s58, 1
          %s262 = smul.addr %s261, 8
          %s263 = scalar_lea.vmem [#allocation5], %s262
          %s264 = smul.u32 2, %s22
          %s266 = ssub.s32 128, 128
          %267 = vsyncadd %s260, %s266
          %s268 = smul.addr %s264, 64
          %s269 = scalar_lea.hbm %s1, %s268
          %s270 = sshll.u32 %s263, 4
          %s271 = int_to_ptr.vmem [resolvable:$true] %s270
          %276 = dma.hbm_to_vmem [thread:$0]  %s269, 128, %s271, %s260, 64, 64, 4
        $region40: #{tpu_custom_call.1} parent=31 // pred_fallthru
          _
      $region32: #{tpu_custom_call.1} parent=5 // pred_fallthru
        _
      %p277 = scmp.le.s32.totalorder 1, %s22
      %p278 = scmp.lt.s32.totalorder %s22, 3
      %p279 = pnand %p277, %p278
      %p280 = pneg %p279
      // Predicated region
      $region41: #{tpu_custom_call.1} parent=5 // pred_check
        _
      $region42: #{tpu_custom_call.1} parent=5 // pred_check_branch
        %282 = sbr.rel (%p279) target = $region44
      $region43: #{tpu_custom_call.1} parent=5 // pred_region
        %s283 = ssub.s32 %s22, 1
        %s284 = sand.u32 %s35, 1
        %s285 = scalar_lea.sflag [#allocation3], %s284
        %s286 = sand.u32 %s35, 1
        %s287 = smul.addr %s286, 8
        %s288 = scalar_lea.vmem [#allocation2], %s287
        // Predicated region
        $region45: #{tpu_custom_call.1} parent=43 // pred_check
          %p289 = pneg %p48
        $region46: #{tpu_custom_call.1} parent=43 // pred_check_branch
          %291 = sbr.rel (%p289) target = $region48
        $region47: #{tpu_custom_call.1} parent=43 // pred_region
          %292 = dma.done %s285, 128
        $region48: #{tpu_custom_call.1} parent=43 // pred_fallthru
          _
        %s293 = sand.u32 %s27, 1
        %s294 = scalar_lea.sflag [#allocation6], %s293
        %s295 = sand.u32 %s61, 1
        %s296 = smul.addr %s295, 8
        %s297 = scalar_lea.vmem [#allocation5], %s296
        // Predicated region
        $region49: #{tpu_custom_call.1} parent=43 // pred_check
          %p298 = pneg %p74
        $region50: #{tpu_custom_call.1} parent=43 // pred_check_branch
          %300 = sbr.rel (%p298) target = $region52
        $region51: #{tpu_custom_call.1} parent=43 // pred_region
          %301 = dma.done %s294, 128
        $region52: #{tpu_custom_call.1} parent=43 // pred_fallthru
          _
        // Predicated region
        $region53: #{tpu_custom_call.1} parent=43 // pred_check
          %p302 = pneg %p95
        $region54: #{tpu_custom_call.1} parent=43 // pred_check_branch
          %304 = sbr.rel (%p302) target = $region56
        $region55: #{tpu_custom_call.1} parent=43 // pred_region
          %305 = dma.done [#allocation6], 128
        $region56: #{tpu_custom_call.1} parent=43 // pred_fallthru
          _
        // Predicated region
        $region57: #{tpu_custom_call.1} parent=43 // pred_check
          %p306 = pneg %p137
        $region58: #{tpu_custom_call.1} parent=43 // pred_check_branch
          %308 = sbr.rel (%p306) target = $region60
        $region59: #{tpu_custom_call.1} parent=43 // pred_region
          %309 = dma.done [#allocation9], 256
        $region60: #{tpu_custom_call.1} parent=43 // pred_fallthru
          _
        %s310 = sand.u32 %s35, 1
        %s311 = scalar_lea.sflag [#allocation3], %s310
        %s312 = sand.u32 %s35, 1
        %s313 = smul.addr %s312, 8
        %s314 = scalar_lea.vmem [#allocation2], %s313
        %p315 = pneg %p48
        %p316 = pneg %p45
        %s317 = sand.u32 %s27, 1
        %s318 = scalar_lea.sflag [#allocation6], %s317
        %s319 = sand.u32 %s61, 1
        %s320 = smul.addr %s319, 8
        %s321 = scalar_lea.vmem [#allocation5], %s320
        %p322 = pneg %p74
        %p323 = pneg %p71
        %p324 = pneg %p95
        %p325 = pneg %p92
        %p326 = pneg %p116
        %p327 = pneg %p113
        %p328 = pneg %p137
        %p329 = pneg %p134
        %p330 = pneg %p158
        %p331 = pneg %p155
        %p332 = pneg %p184
        %p333 = pneg %p181
        %s334 = sand.u32 %s171, 1
        %s335 = scalar_lea.sflag [#allocation4], %s334
        %s336 = sand.u32 %s171, 1
        %s337 = smul.addr %s336, 16
        %s338 = scalar_lea.vmem [#allocation10], %s337
        %s339 = smul.u32 2, %s27
        %s340 = smul.u32 2, %s27
        %s341 = smul.u32 2, %s27
        %v343 = vld [vmem:[%s288] sm:$0xf]
        %v344 = vld [vmem:[%s288 + $0x4] sm:$0xf]
        %v345 = vld [vmem:[%s297] sm:$0xf]
        %v346 = vld [vmem:[%s297 + $0x4] sm:$0xf]
        %v347 = vld [vmem:[%s5] sm:$0x1]
        %v348 = vld [vmem:[%s5 + $0x1] sm:$0x1]
        %v349 = vld [vmem:[%s5 + $0x2] sm:$0x1]
        %v350 = vld [vmem:[%s5 + $0x3] sm:$0x1]
        %v351 = vld [vmem:[#allocation7] sm:$0xf]
        %v352 = vld [vmem:[#allocation7 + $0x4] sm:$0xf]
        %v353 = vlaneseq
        %v354 = vshrl.u32 %v353, 7
        %v355 = vsub.s32 0, %v354
        %v356 = vrot.slane %v347, %v355
        %v359 = vunpack.c.l.b16 %v343
        %v360 = vunpack.c.l.b16 %v344
        %v361 = vpack.c.b16 %v360, %v359
        %v364 = vunpack.c.l.b16 %v351
        %v365 = vunpack.c.l.b16 %v352
        %v366 = vpack.c.b16 %v365, %v364
        %vm368 = vcmask 130048
        %v370 = vsel %vm368, %v361, 0
        %372 = vmatprep.subr.bf16.mxu0 0
        %373 = vmatpush1.bf16.msra.mxu0 %v366
        %374 = vmatprep.subr.bf16.mxu0 0
        %375 = vmatpush1.bf16.msra.mxu0 0
        %376 = vmatprep.subr.bf16.mxu0 0
        %377 = vmatpush1.bf16.msra.mxu0 0
        %378 = vmatprep.subr.bf16.mxu0 0
        %379 = vmatpush1.bf16.msra.mxu0 0
        %380 = vmatprep.subr.bf16.mxu0 0
        %381 = vmatpush1.bf16.msra.mxu0 0
        %382 = vmatprep.subr.bf16.mxu0 0
        %383 = vmatpush1.bf16.msra.mxu0 0
        %384 = vmatprep.subr.bf16.mxu0 0
        %385 = vmatpush1.bf16.msra.mxu0 0
        %386 = vmatprep.subr.bf16.mxu0 0
        %387 = vmatpush1.bf16.msra.mxu0 0
        %388 = vmatprep.subr.bf16.mxu0 0
        %389 = vmatpush1.bf16.msra.mxu0 0
        %390 = vmatprep.subr.bf16.mxu0 0
        %391 = vmatpush1.bf16.msra.mxu0 0
        %392 = vmatprep.subr.bf16.mxu0 0
        %393 = vmatpush1.bf16.msra.mxu0 0
        %394 = vmatprep.subr.bf16.mxu0 0
        %395 = vmatpush1.bf16.msra.mxu0 0
        %396 = vmatprep.subr.bf16.mxu0 0
        %397 = vmatpush1.bf16.msra.mxu0 0
        %398 = vmatprep.subr.bf16.mxu0 0
        %399 = vmatpush1.bf16.msra.mxu0 0
        %400 = vmatprep.subr.bf16.mxu0 0
        %401 = vmatpush1.bf16.msra.mxu0 0
        %402 = vmatprep.subr.bf16.mxu0 0
        %403 = vmatpush1.bf16.msra.mxu0 0
        %404 = vmatprep.mubr.bf16.mxu0 0
        %405 = vmatmul.mubr.bf16.gmra.mrb[0].mxu0 %v370
        %v406 = vpop.f32.mrb[0].mxu0
        %v407 = vadd.f32 %v356, %v406
        %v408 = vpop.f32.mrb[0].mxu0
        %v409 = vpop.f32.mrb[0].mxu0
        %v410 = vadd.f32 %v356, %v409
        %v411 = vpop.f32.mrb[0].mxu0
        %412 = vdwg.mxu0
        %v413 = vld [vmem:[%s3] sm:$0xf]
        %v414 = vld [vmem:[%s3 + $0x4] sm:$0xf]
        %v417 = vunpack.c.l.b16 %v345
        %v418 = vunpack.c.l.b16 %v346
        %v419 = vpack.c.b16 %v418, %v417
        %v422 = vunpack.c.l.b16 %v413
        %v423 = vunpack.c.l.b16 %v414
        %v424 = vpack.c.b16 %v423, %v422
        %v427 = vsel %vm368, %v419, 0
        %429 = vmatprep.subr.bf16.mxu0 0
        %430 = vmatpush1.bf16.msra.mxu0 %v424
        %431 = vmatprep.subr.bf16.mxu0 0
        %432 = vmatpush1.bf16.msra.mxu0 0
        %433 = vmatprep.subr.bf16.mxu0 0
        %434 = vmatpush1.bf16.msra.mxu0 0
        %435 = vmatprep.subr.bf16.mxu0 0
        %436 = vmatpush1.bf16.msra.mxu0 0
        %437 = vmatprep.subr.bf16.mxu0 0
        %438 = vmatpush1.bf16.msra.mxu0 0
        %439 = vmatprep.subr.bf16.mxu0 0
        %440 = vmatpush1.bf16.msra.mxu0 0
        %441 = vmatprep.subr.bf16.mxu0 0
        %442 = vmatpush1.bf16.msra.mxu0 0
        %443 = vmatprep.subr.bf16.mxu0 0
        %444 = vmatpush1.bf16.msra.mxu0 0
        %445 = vmatprep.subr.bf16.mxu0 0
        %446 = vmatpush1.bf16.msra.mxu0 0
        %447 = vmatprep.subr.bf16.mxu0 0
        %448 = vmatpush1.bf16.msra.mxu0 0
        %449 = vmatprep.subr.bf16.mxu0 0
        %450 = vmatpush1.bf16.msra.mxu0 0
        %451 = vmatprep.subr.bf16.mxu0 0
        %452 = vmatpush1.bf16.msra.mxu0 0
        %453 = vmatprep.subr.bf16.mxu0 0
        %454 = vmatpush1.bf16.msra.mxu0 0
        %455 = vmatprep.subr.bf16.mxu0 0
        %456 = vmatpush1.bf16.msra.mxu0 0
        %457 = vmatprep.subr.bf16.mxu0 0
        %458 = vmatpush1.bf16.msra.mxu0 0
        %459 = vmatprep.subr.bf16.mxu0 0
        %460 = vmatpush1.bf16.msra.mxu0 0
        %461 = vmatprep.mubr.bf16.mxu0 0
        %462 = vmatmul.mubr.bf16.gmra.mrb[0].mxu0 %v427
        %v463 = vpop.f32.mrb[0].mxu0
        %v464 = vadd.f32 0.0, %v463
        %v465 = vpop.f32.mrb[0].mxu0
        %v466 = vpop.f32.mrb[0].mxu0
        %v467 = vadd.f32 0.0, %v466
        %v468 = vpop.f32.mrb[0].mxu0
        %469 = vdwg.mxu0
        %v470 = vlaneseq
        %v471 = vshrl.u32 %v470, 7
        %v472 = vsub.s32 0, %v471
        %v473 = vrot.slane %v348, %v472
        %v474 = vadd.f32 %v464, %v473
        %v475 = vadd.f32 %v467, %v473
        %v476 = vlaneseq
        %v477 = vshrl.u32 %v476, 7
        %v478 = vsub.s32 0, %v477
        %v479 = vrot.slane %v349, %v478
        %481 = vrot.lane.b32.xlu0 %v479, 32
        %v482 = vpop.permute.xlu0 %481
        %v484 = vadd.f32 %v464, %v482
        %v485 = vadd.f32 %v467, %v482
        %v486 = vpack.c.bf16 %v407, %v407
        %v487 = vpack.c.bf16 %v410, %v410
        %v488 = vpack.c.bf16 %v474, %v474
        %v489 = vpack.c.bf16 %v475, %v475
        %v490 = vpack.c.bf16 %v484, %v484
        %v491 = vpack.c.bf16 %v485, %v485
        %vm492 = vcmask 64512
        %v494 = vsel %vm492, %v486, 0
        %v497 = vsel %vm492, %v488, 0
        %499 = vmatprep.subr.bf16.mxu0 0
        %500 = vmatpush1.bf16.xpose.msra.mxu0 %v497
        %501 = vmatprep.subr.bf16.mxu0 0
        %502 = vmatpush1.bf16.xpose.msra.mxu0 0
        %503 = vmatprep.subr.bf16.mxu0 0
        %504 = vmatpush1.bf16.xpose.msra.mxu0 0
        %505 = vmatprep.subr.bf16.mxu0 0
        %506 = vmatpush1.bf16.xpose.msra.mxu0 0
        %507 = vmatprep.subr.bf16.mxu0 0
        %508 = vmatpush1.bf16.xpose.msra.mxu0 0
        %509 = vmatprep.subr.bf16.mxu0 0
        %510 = vmatpush1.bf16.xpose.msra.mxu0 0
        %511 = vmatprep.subr.bf16.mxu0 0
        %512 = vmatpush1.bf16.xpose.msra.mxu0 0
        %513 = vmatprep.subr.bf16.mxu0 0
        %514 = vmatpush1.bf16.xpose.msra.mxu0 0
        %515 = vmatprep.subr.bf16.mxu0 0
        %516 = vmatpush1.bf16.xpose.msra.mxu0 0
        %517 = vmatprep.subr.bf16.mxu0 0
        %518 = vmatpush1.bf16.xpose.msra.mxu0 0
        %519 = vmatprep.subr.bf16.mxu0 0
        %520 = vmatpush1.bf16.xpose.msra.mxu0 0
        %521 = vmatprep.subr.bf16.mxu0 0
        %522 = vmatpush1.bf16.xpose.msra.mxu0 0
        %523 = vmatprep.subr.bf16.mxu0 0
        %524 = vmatpush1.bf16.xpose.msra.mxu0 0
        %525 = vmatprep.subr.bf16.mxu0 0
        %526 = vmatpush1.bf16.xpose.msra.mxu0 0
        %527 = vmatprep.subr.bf16.mxu0 0
        %528 = vmatpush1.bf16.xpose.msra.mxu0 0
        %529 = vmatprep.subr.bf16.mxu0 0
        %530 = vmatpush1.bf16.xpose.msra.mxu0 0
        %531 = vmatprep.mubr.bf16.mxu0 0
        %532 = vmatmul.mubr.bf16.gmra.mrb[0].mxu0 %v494
        %v533 = vpop.f32.mrb[0].mxu0
        %v534 = vadd.f32 0.0, %v533
        %v535 = vpop.f32.mrb[0].mxu0
        %v536 = vpop.f32.mrb[0].mxu0
        %v537 = vpop.f32.mrb[0].mxu0
        %538 = vdwg.mxu0
        %v540 = vsel %vm492, %v487, 0
        %v543 = vsel %vm492, %v489, 0
        %545 = vmatprep.subr.bf16.mxu0 0
        %546 = vmatpush1.bf16.xpose.msra.mxu0 %v543
        %547 = vmatprep.subr.bf16.mxu0 0
        %548 = vmatpush1.bf16.xpose.msra.mxu0 0
        %549 = vmatprep.subr.bf16.mxu0 0
        %550 = vmatpush1.bf16.xpose.msra.mxu0 0
        %551 = vmatprep.subr.bf16.mxu0 0
        %552 = vmatpush1.bf16.xpose.msra.mxu0 0
        %553 = vmatprep.subr.bf16.mxu0 0
        %554 = vmatpush1.bf16.xpose.msra.mxu0 0
        %555 = vmatprep.subr.bf16.mxu0 0
        %556 = vmatpush1.bf16.xpose.msra.mxu0 0
        %557 = vmatprep.subr.bf16.mxu0 0
        %558 = vmatpush1.bf16.xpose.msra.mxu0 0
        %559 = vmatprep.subr.bf16.mxu0 0
        %560 = vmatpush1.bf16.xpose.msra.mxu0 0
        %561 = vmatprep.subr.bf16.mxu0 0
        %562 = vmatpush1.bf16.xpose.msra.mxu0 0
        %563 = vmatprep.subr.bf16.mxu0 0
        %564 = vmatpush1.bf16.xpose.msra.mxu0 0
        %565 = vmatprep.subr.bf16.mxu0 0
        %566 = vmatpush1.bf16.xpose.msra.mxu0 0
        %567 = vmatprep.subr.bf16.mxu0 0
        %568 = vmatpush1.bf16.xpose.msra.mxu0 0
        %569 = vmatprep.subr.bf16.mxu0 0
        %570 = vmatpush1.bf16.xpose.msra.mxu0 0
        %571 = vmatprep.subr.bf16.mxu0 0
        %572 = vmatpush1.bf16.xpose.msra.mxu0 0
        %573 = vmatprep.subr.bf16.mxu0 0
        %574 = vmatpush1.bf16.xpose.msra.mxu0 0
        %575 = vmatprep.subr.bf16.mxu0 0
        %576 = vmatpush1.bf16.xpose.msra.mxu0 0
        %577 = vmatprep.mubr.bf16.mxu0 0
        %578 = vmatmul.mubr.bf16.gmra.mrb[0].mxu0 %v540
        %v579 = vpop.f32.mrb[0].mxu0
        %v580 = vadd.f32 0.0, %v579
        %v581 = vpop.f32.mrb[0].mxu0
        %v582 = vpop.f32.mrb[0].mxu0
        %v583 = vpop.f32.mrb[0].mxu0
        %584 = vdwg.mxu0
        %v585 = vsel %vm492, %v534, -inf
        %586 = vmax.xlane.f32.xlu0 %v585
        %v587 = vpop.xlane.xlu0 %586
        %v588 = vsel %vm492, %v580, -inf
        %589 = vmax.xlane.f32.xlu0 %v588
        %v590 = vpop.xlane.xlu0 %589
        %v591 = vsub.f32 %v534, %v587
        %v592 = vsub.f32 %v580, %v590
        %v593 = vmul.f32 %v591, 1.442695
        %v594 = vpow.pop %v593
        %v595 = vmul.f32 %v592, 1.442695
        %v596 = vpow.pop %v595
        %v597 = vsel %vm492, %v594, 0.0
        %598 = vadd.xlane.f32.xlu0 %v597
        %v599 = vpop.xlane.xlu0 %598
        %v600 = vsel %vm492, %v596, 0.0
        %601 = vadd.xlane.f32.xlu0 %v600
        %v602 = vpop.xlane.xlu0 %601
        %v603 = vrcp.pop %v599
        %v604 = vrcp.pop %v602
        %v605 = vmul.f32 %v594, %v603
        %v606 = vmul.f32 %v596, %v604
        %v607 = vpack.c.bf16 %v605, %v605
        %v608 = vpack.c.bf16 %v606, %v606
        %610 = vrot.lane.b32.xlu0 %v490, 96
        %v611 = vpop.permute.xlu0 %610
        %v613 = vsel %vm492, %v607, 0
        %vm615 = vcmask 1043456
        %v617 = vsel %vm615, %v611, 0
        %619 = vmatprep.subr.bf16.mxu0 0
        %620 = vmatpush1.bf16.msra.mxu0 %v617
        %621 = vmatprep.subr.bf16.mxu0 0
        %622 = vmatpush1.bf16.msra.mxu0 0
        %623 = vmatprep.subr.bf16.mxu0 0
        %624 = vmatpush1.bf16.msra.mxu0 0
        %625 = vmatprep.subr.bf16.mxu0 0
        %626 = vmatpush1.bf16.msra.mxu0 0
        %627 = vmatprep.subr.bf16.mxu0 0
        %628 = vmatpush1.bf16.msra.mxu0 0
        %629 = vmatprep.subr.bf16.mxu0 0
        %630 = vmatpush1.bf16.msra.mxu0 0
        %631 = vmatprep.subr.bf16.mxu0 0
        %632 = vmatpush1.bf16.msra.mxu0 0
        %633 = vmatprep.subr.bf16.mxu0 0
        %634 = vmatpush1.bf16.msra.mxu0 0
        %635 = vmatprep.subr.bf16.mxu0 0
        %636 = vmatpush1.bf16.msra.mxu0 0
        %637 = vmatprep.subr.bf16.mxu0 0
        %638 = vmatpush1.bf16.msra.mxu0 0
        %639 = vmatprep.subr.bf16.mxu0 0
        %640 = vmatpush1.bf16.msra.mxu0 0
        %641 = vmatprep.subr.bf16.mxu0 0
        %642 = vmatpush1.bf16.msra.mxu0 0
        %643 = vmatprep.subr.bf16.mxu0 0
        %644 = vmatpush1.bf16.msra.mxu0 0
        %645 = vmatprep.subr.bf16.mxu0 0
        %646 = vmatpush1.bf16.msra.mxu0 0
        %647 = vmatprep.subr.bf16.mxu0 0
        %648 = vmatpush1.bf16.msra.mxu0 0
        %649 = vmatprep.subr.bf16.mxu0 0
        %650 = vmatpush1.bf16.msra.mxu0 0
        %651 = vmatprep.mubr.bf16.mxu0 0
        %652 = vmatmul.mubr.bf16.gmra.mrb[0].mxu0 %v613
        %v653 = vpop.f32.mrb[0].mxu0
        %v654 = vadd.f32 0.0, %v653
        %v655 = vpop.f32.mrb[0].mxu0
        %v656 = vpop.f32.mrb[0].mxu0
        %v657 = vpop.f32.mrb[0].mxu0
        %658 = vdwg.mxu0
        %660 = vrot.lane.b32.xlu0 %v491, 96
        %v661 = vpop.permute.xlu0 %660
        %v663 = vsel %vm492, %v608, 0
        %v666 = vsel %vm615, %v661, 0
        %668 = vmatprep.subr.bf16.mxu0 0
        %669 = vmatpush1.bf16.msra.mxu0 %v666
        %670 = vmatprep.subr.bf16.mxu0 0
        %671 = vmatpush1.bf16.msra.mxu0 0
        %672 = vmatprep.subr.bf16.mxu0 0
        %673 = vmatpush1.bf16.msra.mxu0 0
        %674 = vmatprep.subr.bf16.mxu0 0
        %675 = vmatpush1.bf16.msra.mxu0 0
        %676 = vmatprep.subr.bf16.mxu0 0
        %677 = vmatpush1.bf16.msra.mxu0 0
        %678 = vmatprep.subr.bf16.mxu0 0
        %679 = vmatpush1.bf16.msra.mxu0 0
        %680 = vmatprep.subr.bf16.mxu0 0
        %681 = vmatpush1.bf16.msra.mxu0 0
        %682 = vmatprep.subr.bf16.mxu0 0
        %683 = vmatpush1.bf16.msra.mxu0 0
        %684 = vmatprep.subr.bf16.mxu0 0
        %685 = vmatpush1.bf16.msra.mxu0 0
        %686 = vmatprep.subr.bf16.mxu0 0
        %687 = vmatpush1.bf16.msra.mxu0 0
        %688 = vmatprep.subr.bf16.mxu0 0
        %689 = vmatpush1.bf16.msra.mxu0 0
        %690 = vmatprep.subr.bf16.mxu0 0
        %691 = vmatpush1.bf16.msra.mxu0 0
        %692 = vmatprep.subr.bf16.mxu0 0
        %693 = vmatpush1.bf16.msra.mxu0 0
        %694 = vmatprep.subr.bf16.mxu0 0
        %695 = vmatpush1.bf16.msra.mxu0 0
        %696 = vmatprep.subr.bf16.mxu0 0
        %697 = vmatpush1.bf16.msra.mxu0 0
        %698 = vmatprep.subr.bf16.mxu0 0
        %699 = vmatpush1.bf16.msra.mxu0 0
        %700 = vmatprep.mubr.bf16.mxu0 0
        %701 = vmatmul.mubr.bf16.gmra.mrb[0].mxu0 %v663
        %v702 = vpop.f32.mrb[0].mxu0
        %v703 = vadd.f32 0.0, %v702
        %v704 = vpop.f32.mrb[0].mxu0
        %v705 = vpop.f32.mrb[0].mxu0
        %v706 = vpop.f32.mrb[0].mxu0
        %707 = vdwg.mxu0
        %709 = vrot.lane.b32.xlu0 %v486, 120
        %v710 = vpop.permute.xlu0 %709
        %712 = vrot.lane.b32.xlu0 %v488, 120
        %v713 = vpop.permute.xlu0 %712
        %v715 = vsel %vm492, %v710, 0
        %v718 = vsel %vm492, %v713, 0
        %720 = vmatprep.subr.bf16.mxu0 0
        %721 = vmatpush1.bf16.xpose.msra.mxu0 %v718
        %722 = vmatprep.subr.bf16.mxu0 0
        %723 = vmatpush1.bf16.xpose.msra.mxu0 0
        %724 = vmatprep.subr.bf16.mxu0 0
        %725 = vmatpush1.bf16.xpose.msra.mxu0 0
        %726 = vmatprep.subr.bf16.mxu0 0
        %727 = vmatpush1.bf16.xpose.msra.mxu0 0
        %728 = vmatprep.subr.bf16.mxu0 0
        %729 = vmatpush1.bf16.xpose.msra.mxu0 0
        %730 = vmatprep.subr.bf16.mxu0 0
        %731 = vmatpush1.bf16.xpose.msra.mxu0 0
        %732 = vmatprep.subr.bf16.mxu0 0
        %733 = vmatpush1.bf16.xpose.msra.mxu0 0
        %734 = vmatprep.subr.bf16.mxu0 0
        %735 = vmatpush1.bf16.xpose.msra.mxu0 0
        %736 = vmatprep.subr.bf16.mxu0 0
        %737 = vmatpush1.bf16.xpose.msra.mxu0 0
        %738 = vmatprep.subr.bf16.mxu0 0
        %739 = vmatpush1.bf16.xpose.msra.mxu0 0
        %740 = vmatprep.subr.bf16.mxu0 0
        %741 = vmatpush1.bf16.xpose.msra.mxu0 0
        %742 = vmatprep.subr.bf16.mxu0 0
        %743 = vmatpush1.bf16.xpose.msra.mxu0 0
        %744 = vmatprep.subr.bf16.mxu0 0
        %745 = vmatpush1.bf16.xpose.msra.mxu0 0
        %746 = vmatprep.subr.bf16.mxu0 0
        %747 = vmatpush1.bf16.xpose.msra.mxu0 0
        %748 = vmatprep.subr.bf16.mxu0 0
        %749 = vmatpush1.bf16.xpose.msra.mxu0 0
        %750 = vmatprep.subr.bf16.mxu0 0
        %751 = vmatpush1.bf16.xpose.msra.mxu0 0
        %752 = vmatprep.mubr.bf16.mxu0 0
        %753 = vmatmul.mubr.bf16.gmra.mrb[0].mxu0 %v715
        %v754 = vpop.f32.mrb[0].mxu0
        %v755 = vadd.f32 0.0, %v754
        %v756 = vpop.f32.mrb[0].mxu0
        %v757 = vpop.f32.mrb[0].mxu0
        %v758 = vpop.f32.mrb[0].mxu0
        %759 = vdwg.mxu0
        %761 = vrot.lane.b32.xlu0 %v487, 120
        %v762 = vpop.permute.xlu0 %761
        %764 = vrot.lane.b32.xlu0 %v489, 120
        %v765 = vpop.permute.xlu0 %764
        %v767 = vsel %vm492, %v762, 0
        %v770 = vsel %vm492, %v765, 0
        %772 = vmatprep.subr.bf16.mxu0 0
        %773 = vmatpush1.bf16.xpose.msra.mxu0 %v770
        %774 = vmatprep.subr.bf16.mxu0 0
        %775 = vmatpush1.bf16.xpose.msra.mxu0 0
        %776 = vmatprep.subr.bf16.mxu0 0
        %777 = vmatpush1.bf16.xpose.msra.mxu0 0
        %778 = vmatprep.subr.bf16.mxu0 0
        %779 = vmatpush1.bf16.xpose.msra.mxu0 0
        %780 = vmatprep.subr.bf16.mxu0 0
        %781 = vmatpush1.bf16.xpose.msra.mxu0 0
        %782 = vmatprep.subr.bf16.mxu0 0
        %783 = vmatpush1.bf16.xpose.msra.mxu0 0
        %784 = vmatprep.subr.bf16.mxu0 0
        %785 = vmatpush1.bf16.xpose.msra.mxu0 0
        %786 = vmatprep.subr.bf16.mxu0 0
        %787 = vmatpush1.bf16.xpose.msra.mxu0 0
        %788 = vmatprep.subr.bf16.mxu0 0
        %789 = vmatpush1.bf16.xpose.msra.mxu0 0
        %790 = vmatprep.subr.bf16.mxu0 0
        %791 = vmatpush1.bf16.xpose.msra.mxu0 0
        %792 = vmatprep.subr.bf16.mxu0 0
        %793 = vmatpush1.bf16.xpose.msra.mxu0 0
        %794 = vmatprep.subr.bf16.mxu0 0
        %795 = vmatpush1.bf16.xpose.msra.mxu0 0
        %796 = vmatprep.subr.bf16.mxu0 0
        %797 = vmatpush1.bf16.xpose.msra.mxu0 0
        %798 = vmatprep.subr.bf16.mxu0 0
        %799 = vmatpush1.bf16.xpose.msra.mxu0 0
        %800 = vmatprep.subr.bf16.mxu0 0
        %801 = vmatpush1.bf16.xpose.msra.mxu0 0
        %802 = vmatprep.subr.bf16.mxu0 0
        %803 = vmatpush1.bf16.xpose.msra.mxu0 0
        %804 = vmatprep.mubr.bf16.mxu0 0
        %805 = vmatmul.mubr.bf16.gmra.mrb[0].mxu0 %v767
        %v806 = vpop.f32.mrb[0].mxu0
        %v807 = vadd.f32 0.0, %v806
        %v808 = vpop.f32.mrb[0].mxu0
        %v809 = vpop.f32.mrb[0].mxu0
        %v810 = vpop.f32.mrb[0].mxu0
        %811 = vdwg.mxu0
        %v812 = vsel %vm492, %v755, -inf
        %813 = vmax.xlane.f32.xlu0 %v812
        %v814 = vpop.xlane.xlu0 %813
        %v815 = vsel %vm492, %v807, -inf
        %816 = vmax.xlane.f32.xlu0 %v815
        %v817 = vpop.xlane.xlu0 %816
        %v818 = vsub.f32 %v755, %v814
        %v819 = vsub.f32 %v807, %v817
        %v820 = vmul.f32 %v818, 1.442695
        %v821 = vpow.pop %v820
        %v822 = vmul.f32 %v819, 1.442695
        %v823 = vpow.pop %v822
        %v824 = vsel %vm492, %v821, 0.0
        %825 = vadd.xlane.f32.xlu0 %v824
        %v826 = vpop.xlane.xlu0 %825
        %v827 = vsel %vm492, %v823, 0.0
        %828 = vadd.xlane.f32.xlu0 %v827
        %v829 = vpop.xlane.xlu0 %828
        %v830 = vrcp.pop %v826
        %v831 = vrcp.pop %v829
        %v832 = vmul.f32 %v821, %v830
        %v833 = vmul.f32 %v823, %v831
        %v834 = vpack.c.bf16 %v832, %v832
        %v835 = vpack.c.bf16 %v833, %v833
        %836 = vrot.lane.b32.xlu0 %v490, 88
        %v837 = vpop.permute.xlu0 %836
        %v839 = vsel %vm492, %v834, 0
        %v842 = vsel %vm615, %v837, 0
        %844 = vmatprep.subr.bf16.mxu0 0
        %845 = vmatpush1.bf16.msra.mxu0 %v842
        %846 = vmatprep.subr.bf16.mxu0 0
        %847 = vmatpush1.bf16.msra.mxu0 0
        %848 = vmatprep.subr.bf16.mxu0 0
        %849 = vmatpush1.bf16.msra.mxu0 0
        %850 = vmatprep.subr.bf16.mxu0 0
        %851 = vmatpush1.bf16.msra.mxu0 0
        %852 = vmatprep.subr.bf16.mxu0 0
        %853 = vmatpush1.bf16.msra.mxu0 0
        %854 = vmatprep.subr.bf16.mxu0 0
        %855 = vmatpush1.bf16.msra.mxu0 0
        %856 = vmatprep.subr.bf16.mxu0 0
        %857 = vmatpush1.bf16.msra.mxu0 0
        %858 = vmatprep.subr.bf16.mxu0 0
        %859 = vmatpush1.bf16.msra.mxu0 0
        %860 = vmatprep.subr.bf16.mxu0 0
        %861 = vmatpush1.bf16.msra.mxu0 0
        %862 = vmatprep.subr.bf16.mxu0 0
        %863 = vmatpush1.bf16.msra.mxu0 0
        %864 = vmatprep.subr.bf16.mxu0 0
        %865 = vmatpush1.bf16.msra.mxu0 0
        %866 = vmatprep.subr.bf16.mxu0 0
        %867 = vmatpush1.bf16.msra.mxu0 0
        %868 = vmatprep.subr.bf16.mxu0 0
        %869 = vmatpush1.bf16.msra.mxu0 0
        %870 = vmatprep.subr.bf16.mxu0 0
        %871 = vmatpush1.bf16.msra.mxu0 0
        %872 = vmatprep.subr.bf16.mxu0 0
        %873 = vmatpush1.bf16.msra.mxu0 0
        %874 = vmatprep.subr.bf16.mxu0 0
        %875 = vmatpush1.bf16.msra.mxu0 0
        %876 = vmatprep.mubr.bf16.mxu0 0
        %877 = vmatmul.mubr.bf16.gmra.mrb[0].mxu0 %v839
        %v878 = vpop.f32.mrb[0].mxu0
        %v879 = vadd.f32 0.0, %v878
        %v880 = vpop.f32.mrb[0].mxu0
        %v881 = vpop.f32.mrb[0].mxu0
        %v882 = vpop.f32.mrb[0].mxu0
        %883 = vdwg.mxu0
        %884 = vrot.lane.b32.xlu0 %v491, 88
        %v885 = vpop.permute.xlu0 %884
        %v887 = vsel %vm492, %v835, 0
        %v890 = vsel %vm615, %v885, 0
        %892 = vmatprep.subr.bf16.mxu0 0
        %893 = vmatpush1.bf16.msra.mxu0 %v890
        %894 = vmatprep.subr.bf16.mxu0 0
        %895 = vmatpush1.bf16.msra.mxu0 0
        %896 = vmatprep.subr.bf16.mxu0 0
        %897 = vmatpush1.bf16.msra.mxu0 0
        %898 = vmatprep.subr.bf16.mxu0 0
        %899 = vmatpush1.bf16.msra.mxu0 0
        %900 = vmatprep.subr.bf16.mxu0 0
        %901 = vmatpush1.bf16.msra.mxu0 0
        %902 = vmatprep.subr.bf16.mxu0 0
        %903 = vmatpush1.bf16.msra.mxu0 0
        %904 = vmatprep.subr.bf16.mxu0 0
        %905 = vmatpush1.bf16.msra.mxu0 0
        %906 = vmatprep.subr.bf16.mxu0 0
        %907 = vmatpush1.bf16.msra.mxu0 0
        %908 = vmatprep.subr.bf16.mxu0 0
        %909 = vmatpush1.bf16.msra.mxu0 0
        %910 = vmatprep.subr.bf16.mxu0 0
        %911 = vmatpush1.bf16.msra.mxu0 0
        %912 = vmatprep.subr.bf16.mxu0 0
        %913 = vmatpush1.bf16.msra.mxu0 0
        %914 = vmatprep.subr.bf16.mxu0 0
        %915 = vmatpush1.bf16.msra.mxu0 0
        %916 = vmatprep.subr.bf16.mxu0 0
        %917 = vmatpush1.bf16.msra.mxu0 0
        %918 = vmatprep.subr.bf16.mxu0 0
        %919 = vmatpush1.bf16.msra.mxu0 0
        %920 = vmatprep.subr.bf16.mxu0 0
        %921 = vmatpush1.bf16.msra.mxu0 0
        %922 = vmatprep.subr.bf16.mxu0 0
        %923 = vmatpush1.bf16.msra.mxu0 0
        %924 = vmatprep.mubr.bf16.mxu0 0
        %925 = vmatmul.mubr.bf16.gmra.mrb[0].mxu0 %v887
        %v926 = vpop.f32.mrb[0].mxu0
        %v927 = vadd.f32 0.0, %v926
        %v928 = vpop.f32.mrb[0].mxu0
        %v929 = vpop.f32.mrb[0].mxu0
        %v930 = vpop.f32.mrb[0].mxu0
        %931 = vdwg.mxu0
        %932 = vrot.lane.b32.xlu0 %v486, 112
        %v933 = vpop.permute.xlu0 %932
        %934 = vrot.lane.b32.xlu0 %v488, 112
        %v935 = vpop.permute.xlu0 %934
        %v937 = vsel %vm492, %v933, 0
        %v940 = vsel %vm492, %v935, 0
        %942 = vmatprep.subr.bf16.mxu0 0
        %943 = vmatpush1.bf16.xpose.msra.mxu0 %v940
        %944 = vmatprep.subr.bf16.mxu0 0
        %945 = vmatpush1.bf16.xpose.msra.mxu0 0
        %946 = vmatprep.subr.bf16.mxu0 0
        %947 = vmatpush1.bf16.xpose.msra.mxu0 0
        %948 = vmatprep.subr.bf16.mxu0 0
        %949 = vmatpush1.bf16.xpose.msra.mxu0 0
        %950 = vmatprep.subr.bf16.mxu0 0
        %951 = vmatpush1.bf16.xpose.msra.mxu0 0
        %952 = vmatprep.subr.bf16.mxu0 0
        %953 = vmatpush1.bf16.xpose.msra.mxu0 0
        %954 = vmatprep.subr.bf16.mxu0 0
        %955 = vmatpush1.bf16.xpose.msra.mxu0 0
        %956 = vmatprep.subr.bf16.mxu0 0
        %957 = vmatpush1.bf16.xpose.msra.mxu0 0
        %958 = vmatprep.subr.bf16.mxu0 0
        %959 = vmatpush1.bf16.xpose.msra.mxu0 0
        %960 = vmatprep.subr.bf16.mxu0 0
        %961 = vmatpush1.bf16.xpose.msra.mxu0 0
        %962 = vmatprep.subr.bf16.mxu0 0
        %963 = vmatpush1.bf16.xpose.msra.mxu0 0
        %964 = vmatprep.subr.bf16.mxu0 0
        %965 = vmatpush1.bf16.xpose.msra.mxu0 0
        %966 = vmatprep.subr.bf16.mxu0 0
        %967 = vmatpush1.bf16.xpose.msra.mxu0 0
        %968 = vmatprep.subr.bf16.mxu0 0
        %969 = vmatpush1.bf16.xpose.msra.mxu0 0
        %970 = vmatprep.subr.bf16.mxu0 0
        %971 = vmatpush1.bf16.xpose.msra.mxu0 0
        %972 = vmatprep.subr.bf16.mxu0 0
        %973 = vmatpush1.bf16.xpose.msra.mxu0 0
        %974 = vmatprep.mubr.bf16.mxu0 0
        %975 = vmatmul.mubr.bf16.gmra.mrb[0].mxu0 %v937
        %v976 = vpop.f32.mrb[0].mxu0
        %v977 = vadd.f32 0.0, %v976
        %v978 = vpop.f32.mrb[0].mxu0
        %v979 = vpop.f32.mrb[0].mxu0
        %v980 = vpop.f32.mrb[0].mxu0
        %981 = vdwg.mxu0
        %982 = vrot.lane.b32.xlu0 %v487, 112
        %v983 = vpop.permute.xlu0 %982
        %984 = vrot.lane.b32.xlu0 %v489, 112
        %v985 = vpop.permute.xlu0 %984
        %v987 = vsel %vm492, %v983, 0
        %v990 = vsel %vm492, %v985, 0
        %992 = vmatprep.subr.bf16.mxu0 0
        %993 = vmatpush1.bf16.xpose.msra.mxu0 %v990
        %994 = vmatprep.subr.bf16.mxu0 0
        %995 = vmatpush1.bf16.xpose.msra.mxu0 0
        %996 = vmatprep.subr.bf16.mxu0 0
        %997 = vmatpush1.bf16.xpose.msra.mxu0 0
        %998 = vmatprep.subr.bf16.mxu0 0
        %999 = vmatpush1.bf16.xpose.msra.mxu0 0
        %1000 = vmatprep.subr.bf16.mxu0 0
        %1001 = vmatpush1.bf16.xpose.msra.mxu0 0
        %1002 = vmatprep.subr.bf16.mxu0 0
        %1003 = vmatpush1.bf16.xpose.msra.mxu0 0
        %1004 = vmatprep.subr.bf16.mxu0 0
        %1005 = vmatpush1.bf16.xpose.msra.mxu0 0
        %1006 = vmatprep.subr.bf16.mxu0 0
        %1007 = vmatpush1.bf16.xpose.msra.mxu0 0
        %1008 = vmatprep.subr.bf16.mxu0 0
        %1009 = vmatpush1.bf16.xpose.msra.mxu0 0
        %1010 = vmatprep.subr.bf16.mxu0 0
        %1011 = vmatpush1.bf16.xpose.msra.mxu0 0
        %1012 = vmatprep.subr.bf16.mxu0 0
        %1013 = vmatpush1.bf16.xpose.msra.mxu0 0
        %1014 = vmatprep.subr.bf16.mxu0 0
        %1015 = vmatpush1.bf16.xpose.msra.mxu0 0
        %1016 = vmatprep.subr.bf16.mxu0 0
        %1017 = vmatpush1.bf16.xpose.msra.mxu0 0
        %1018 = vmatprep.subr.bf16.mxu0 0
        %1019 = vmatpush1.bf16.xpose.msra.mxu0 0
        %1020 = vmatprep.subr.bf16.mxu0 0
        %1021 = vmatpush1.bf16.xpose.msra.mxu0 0
        %1022 = vmatprep.subr.bf16.mxu0 0
        %1023 = vmatpush1.bf16.xpose.msra.mxu0 0
        %1024 = vmatprep.mubr.bf16.mxu0 0
        %1025 = vmatmul.mubr.bf16.gmra.mrb[0].mxu0 %v987
        %v1026 = vpop.f32.mrb[0].mxu0
        %v1027 = vadd.f32 0.0, %v1026
        %v1028 = vpop.f32.mrb[0].mxu0
        %v1029 = vpop.f32.mrb[0].mxu0
        %v1030 = vpop.f32.mrb[0].mxu0
        %1031 = vdwg.mxu0
        %v1032 = vsel %vm492, %v977, -inf
        %1033 = vmax.xlane.f32.xlu0 %v1032
        %v1034 = vpop.xlane.xlu0 %1033
        %v1035 = vsel %vm492, %v1027, -inf
        %1036 = vmax.xlane.f32.xlu0 %v1035
        %v1037 = vpop.xlane.xlu0 %1036
        %v1038 = vsub.f32 %v977, %v1034
        %v1039 = vsub.f32 %v1027, %v1037
        %v1040 = vmul.f32 %v1038, 1.442695
        %v1041 = vpow.pop %v1040
        %v1042 = vmul.f32 %v1039, 1.442695
        %v1043 = vpow.pop %v1042
        %v1044 = vsel %vm492, %v1041, 0.0
        %1045 = vadd.xlane.f32.xlu0 %v1044
        %v1046 = vpop.xlane.xlu0 %1045
        %v1047 = vsel %vm492, %v1043, 0.0
        %1048 = vadd.xlane.f32.xlu0 %v1047
        %v1049 = vpop.xlane.xlu0 %1048
        %v1050 = vrcp.pop %v1046
        %v1051 = vrcp.pop %v1049
        %v1052 = vmul.f32 %v1041, %v1050
        %v1053 = vmul.f32 %v1043, %v1051
        %v1054 = vpack.c.bf16 %v1052, %v1052
        %v1055 = vpack.c.bf16 %v1053, %v1053
        %1056 = vrot.lane.b32.xlu0 %v490, 80
        %v1057 = vpop.permute.xlu0 %1056
        %v1059 = vsel %vm492, %v1054, 0
        %v1062 = vsel %vm615, %v1057, 0
        %1064 = vmatprep.subr.bf16.mxu0 0
        %1065 = vmatpush1.bf16.msra.mxu0 %v1062
        %1066 = vmatprep.subr.bf16.mxu0 0
        %1067 = vmatpush1.bf16.msra.mxu0 0
        %1068 = vmatprep.subr.bf16.mxu0 0
        %1069 = vmatpush1.bf16.msra.mxu0 0
        %1070 = vmatprep.subr.bf16.mxu0 0
        %1071 = vmatpush1.bf16.msra.mxu0 0
        %1072 = vmatprep.subr.bf16.mxu0 0
        %1073 = vmatpush1.bf16.msra.mxu0 0
        %1074 = vmatprep.subr.bf16.mxu0 0
        %1075 = vmatpush1.bf16.msra.mxu0 0
        %1076 = vmatprep.subr.bf16.mxu0 0
        %1077 = vmatpush1.bf16.msra.mxu0 0
        %1078 = vmatprep.subr.bf16.mxu0 0
        %1079 = vmatpush1.bf16.msra.mxu0 0
        %1080 = vmatprep.subr.bf16.mxu0 0
        %1081 = vmatpush1.bf16.msra.mxu0 0
        %1082 = vmatprep.subr.bf16.mxu0 0
        %1083 = vmatpush1.bf16.msra.mxu0 0
        %1084 = vmatprep.subr.bf16.mxu0 0
        %1085 = vmatpush1.bf16.msra.mxu0 0
        %1086 = vmatprep.subr.bf16.mxu0 0
        %1087 = vmatpush1.bf16.msra.mxu0 0
        %1088 = vmatprep.subr.bf16.mxu0 0
        %1089 = vmatpush1.bf16.msra.mxu0 0
        %1090 = vmatprep.subr.bf16.mxu0 0
        %1091 = vmatpush1.bf16.msra.mxu0 0
        %1092 = vmatprep.subr.bf16.mxu0 0
        %1093 = vmatpush1.bf16.msra.mxu0 0
        %1094 = vmatprep.subr.bf16.mxu0 0
        %1095 = vmatpush1.bf16.msra.mxu0 0
        %1096 = vmatprep.mubr.bf16.mxu0 0
        %1097 = vmatmul.mubr.bf16.gmra.mrb[0].mxu0 %v1059
        %v1098 = vpop.f32.mrb[0].mxu0
        %v1099 = vadd.f32 0.0, %v1098
        %v1100 = vpop.f32.mrb[0].mxu0
        %v1101 = vpop.f32.mrb[0].mxu0
        %v1102 = vpop.f32.mrb[0].mxu0
        %1103 = vdwg.mxu0
        %1104 = vrot.lane.b32.xlu0 %v491, 80
        %v1105 = vpop.permute.xlu0 %1104
        %v1107 = vsel %vm492, %v1055, 0
        %v1110 = vsel %vm615, %v1105, 0
        %1112 = vmatprep.subr.bf16.mxu0 0
        %1113 = vmatpush1.bf16.msra.mxu0 %v1110
        %1114 = vmatprep.subr.bf16.mxu0 0
        %1115 = vmatpush1.bf16.msra.mxu0 0
        %1116 = vmatprep.subr.bf16.mxu0 0
        %1117 = vmatpush1.bf16.msra.mxu0 0
        %1118 = vmatprep.subr.bf16.mxu0 0
        %1119 = vmatpush1.bf16.msra.mxu0 0
        %1120 = vmatprep.subr.bf16.mxu0 0
        %1121 = vmatpush1.bf16.msra.mxu0 0
        %1122 = vmatprep.subr.bf16.mxu0 0
        %1123 = vmatpush1.bf16.msra.mxu0 0
        %1124 = vmatprep.subr.bf16.mxu0 0
        %1125 = vmatpush1.bf16.msra.mxu0 0
        %1126 = vmatprep.subr.bf16.mxu0 0
        %1127 = vmatpush1.bf16.msra.mxu0 0
        %1128 = vmatprep.subr.bf16.mxu0 0
        %1129 = vmatpush1.bf16.msra.mxu0 0
        %1130 = vmatprep.subr.bf16.mxu0 0
        %1131 = vmatpush1.bf16.msra.mxu0 0
        %1132 = vmatprep.subr.bf16.mxu0 0
        %1133 = vmatpush1.bf16.msra.mxu0 0
        %1134 = vmatprep.subr.bf16.mxu0 0
        %1135 = vmatpush1.bf16.msra.mxu0 0
        %1136 = vmatprep.subr.bf16.mxu0 0
        %1137 = vmatpush1.bf16.msra.mxu0 0
        %1138 = vmatprep.subr.bf16.mxu0 0
        %1139 = vmatpush1.bf16.msra.mxu0 0
        %1140 = vmatprep.subr.bf16.mxu0 0
        %1141 = vmatpush1.bf16.msra.mxu0 0
        %1142 = vmatprep.subr.bf16.mxu0 0
        %1143 = vmatpush1.bf16.msra.mxu0 0
        %1144 = vmatprep.mubr.bf16.mxu0 0
        %1145 = vmatmul.mubr.bf16.gmra.mrb[0].mxu0 %v1107
        %v1146 = vpop.f32.mrb[0].mxu0
        %v1147 = vadd.f32 0.0, %v1146
        %v1148 = vpop.f32.mrb[0].mxu0
        %v1149 = vpop.f32.mrb[0].mxu0
        %v1150 = vpop.f32.mrb[0].mxu0
        %1151 = vdwg.mxu0
        %1152 = vrot.lane.b32.xlu0 %v486, 104
        %v1153 = vpop.permute.xlu0 %1152
        %1154 = vrot.lane.b32.xlu0 %v488, 104
        %v1155 = vpop.permute.xlu0 %1154
        %v1157 = vsel %vm492, %v1153, 0
        %v1160 = vsel %vm492, %v1155, 0
        %1162 = vmatprep.subr.bf16.mxu0 0
        %1163 = vmatpush1.bf16.xpose.msra.mxu0 %v1160
        %1164 = vmatprep.subr.bf16.mxu0 0
        %1165 = vmatpush1.bf16.xpose.msra.mxu0 0
        %1166 = vmatprep.subr.bf16.mxu0 0
        %1167 = vmatpush1.bf16.xpose.msra.mxu0 0
        %1168 = vmatprep.subr.bf16.mxu0 0
        %1169 = vmatpush1.bf16.xpose.msra.mxu0 0
        %1170 = vmatprep.subr.bf16.mxu0 0
        %1171 = vmatpush1.bf16.xpose.msra.mxu0 0
        %1172 = vmatprep.subr.bf16.mxu0 0
        %1173 = vmatpush1.bf16.xpose.msra.mxu0 0
        %1174 = vmatprep.subr.bf16.mxu0 0
        %1175 = vmatpush1.bf16.xpose.msra.mxu0 0
        %1176 = vmatprep.subr.bf16.mxu0 0
        %1177 = vmatpush1.bf16.xpose.msra.mxu0 0
        %1178 = vmatprep.subr.bf16.mxu0 0
        %1179 = vmatpush1.bf16.xpose.msra.mxu0 0
        %1180 = vmatprep.subr.bf16.mxu0 0
        %1181 = vmatpush1.bf16.xpose.msra.mxu0 0
        %1182 = vmatprep.subr.bf16.mxu0 0
        %1183 = vmatpush1.bf16.xpose.msra.mxu0 0
        %1184 = vmatprep.subr.bf16.mxu0 0
        %1185 = vmatpush1.bf16.xpose.msra.mxu0 0
        %1186 = vmatprep.subr.bf16.mxu0 0
        %1187 = vmatpush1.bf16.xpose.msra.mxu0 0
        %1188 = vmatprep.subr.bf16.mxu0 0
        %1189 = vmatpush1.bf16.xpose.msra.mxu0 0
        %1190 = vmatprep.subr.bf16.mxu0 0
        %1191 = vmatpush1.bf16.xpose.msra.mxu0 0
        %1192 = vmatprep.subr.bf16.mxu0 0
        %1193 = vmatpush1.bf16.xpose.msra.mxu0 0
        %1194 = vmatprep.mubr.bf16.mxu0 0
        %1195 = vmatmul.mubr.bf16.gmra.mrb[0].mxu0 %v1157
        %v1196 = vpop.f32.mrb[0].mxu0
        %v1197 = vadd.f32 0.0, %v1196
        %v1198 = vpop.f32.mrb[0].mxu0
        %v1199 = vpop.f32.mrb[0].mxu0
        %v1200 = vpop.f32.mrb[0].mxu0
        %1201 = vdwg.mxu0
        %1202 = vrot.lane.b32.xlu0 %v487, 104
        %v1203 = vpop.permute.xlu0 %1202
        %1204 = vrot.lane.b32.xlu0 %v489, 104
        %v1205 = vpop.permute.xlu0 %1204
        %v1207 = vsel %vm492, %v1203, 0
        %v1210 = vsel %vm492, %v1205, 0
        %1212 = vmatprep.subr.bf16.mxu0 0
        %1213 = vmatpush1.bf16.xpose.msra.mxu0 %v1210
        %1214 = vmatprep.subr.bf16.mxu0 0
        %1215 = vmatpush1.bf16.xpose.msra.mxu0 0
        %1216 = vmatprep.subr.bf16.mxu0 0
        %1217 = vmatpush1.bf16.xpose.msra.mxu0 0
        %1218 = vmatprep.subr.bf16.mxu0 0
        %1219 = vmatpush1.bf16.xpose.msra.mxu0 0
        %1220 = vmatprep.subr.bf16.mxu0 0
        %1221 = vmatpush1.bf16.xpose.msra.mxu0 0
        %1222 = vmatprep.subr.bf16.mxu0 0
        %1223 = vmatpush1.bf16.xpose.msra.mxu0 0
        %1224 = vmatprep.subr.bf16.mxu0 0
        %1225 = vmatpush1.bf16.xpose.msra.mxu0 0
        %1226 = vmatprep.subr.bf16.mxu0 0
        %1227 = vmatpush1.bf16.xpose.msra.mxu0 0
        %1228 = vmatprep.subr.bf16.mxu0 0
        %1229 = vmatpush1.bf16.xpose.msra.mxu0 0
        %1230 = vmatprep.subr.bf16.mxu0 0
        %1231 = vmatpush1.bf16.xpose.msra.mxu0 0
        %1232 = vmatprep.subr.bf16.mxu0 0
        %1233 = vmatpush1.bf16.xpose.msra.mxu0 0
        %1234 = vmatprep.subr.bf16.mxu0 0
        %1235 = vmatpush1.bf16.xpose.msra.mxu0 0
        %1236 = vmatprep.subr.bf16.mxu0 0
        %1237 = vmatpush1.bf16.xpose.msra.mxu0 0
        %1238 = vmatprep.subr.bf16.mxu0 0
        %1239 = vmatpush1.bf16.xpose.msra.mxu0 0
        %1240 = vmatprep.subr.bf16.mxu0 0
        %1241 = vmatpush1.bf16.xpose.msra.mxu0 0
        %1242 = vmatprep.subr.bf16.mxu0 0
        %1243 = vmatpush1.bf16.xpose.msra.mxu0 0
        %1244 = vmatprep.mubr.bf16.mxu0 0
        %1245 = vmatmul.mubr.bf16.gmra.mrb[0].mxu0 %v1207
        %v1246 = vpop.f32.mrb[0].mxu0
        %v1247 = vadd.f32 0.0, %v1246
        %v1248 = vpop.f32.mrb[0].mxu0
        %v1249 = vpop.f32.mrb[0].mxu0
        %v1250 = vpop.f32.mrb[0].mxu0
        %1251 = vdwg.mxu0
        %v1252 = vsel %vm492, %v1197, -inf
        %1253 = vmax.xlane.f32.xlu0 %v1252
        %v1254 = vpop.xlane.xlu0 %1253
        %v1255 = vsel %vm492, %v1247, -inf
        %1256 = vmax.xlane.f32.xlu0 %v1255
        %v1257 = vpop.xlane.xlu0 %1256
        %v1258 = vsub.f32 %v1197, %v1254
        %v1259 = vsub.f32 %v1247, %v1257
        %v1260 = vmul.f32 %v1258, 1.442695
        %v1261 = vpow.pop %v1260
        %v1262 = vmul.f32 %v1259, 1.442695
        %v1263 = vpow.pop %v1262
        %v1264 = vsel %vm492, %v1261, 0.0
        %1265 = vadd.xlane.f32.xlu0 %v1264
        %v1266 = vpop.xlane.xlu0 %1265
        %v1267 = vsel %vm492, %v1263, 0.0
        %1268 = vadd.xlane.f32.xlu0 %v1267
        %v1269 = vpop.xlane.xlu0 %1268
        %v1270 = vrcp.pop %v1266
        %v1271 = vrcp.pop %v1269
        %v1272 = vmul.f32 %v1261, %v1270
        %v1273 = vmul.f32 %v1263, %v1271
        %v1274 = vpack.c.bf16 %v1272, %v1272
        %v1275 = vpack.c.bf16 %v1273, %v1273
        %1276 = vrot.lane.b32.xlu0 %v490, 72
        %v1277 = vpop.permute.xlu0 %1276
        %v1279 = vsel %vm492, %v1274, 0
        %v1282 = vsel %vm615, %v1277, 0
        %1284 = vmatprep.subr.bf16.mxu0 0
        %1285 = vmatpush1.bf16.msra.mxu0 %v1282
        %1286 = vmatprep.subr.bf16.mxu0 0
        %1287 = vmatpush1.bf16.msra.mxu0 0
        %1288 = vmatprep.subr.bf16.mxu0 0
        %1289 = vmatpush1.bf16.msra.mxu0 0
        %1290 = vmatprep.subr.bf16.mxu0 0
        %1291 = vmatpush1.bf16.msra.mxu0 0
        %1292 = vmatprep.subr.bf16.mxu0 0
        %1293 = vmatpush1.bf16.msra.mxu0 0
        %1294 = vmatprep.subr.bf16.mxu0 0
        %1295 = vmatpush1.bf16.msra.mxu0 0
        %1296 = vmatprep.subr.bf16.mxu0 0
        %1297 = vmatpush1.bf16.msra.mxu0 0
        %1298 = vmatprep.subr.bf16.mxu0 0
        %1299 = vmatpush1.bf16.msra.mxu0 0
        %1300 = vmatprep.subr.bf16.mxu0 0
        %1301 = vmatpush1.bf16.msra.mxu0 0
        %1302 = vmatprep.subr.bf16.mxu0 0
        %1303 = vmatpush1.bf16.msra.mxu0 0
        %1304 = vmatprep.subr.bf16.mxu0 0
        %1305 = vmatpush1.bf16.msra.mxu0 0
        %1306 = vmatprep.subr.bf16.mxu0 0
        %1307 = vmatpush1.bf16.msra.mxu0 0
        %1308 = vmatprep.subr.bf16.mxu0 0
        %1309 = vmatpush1.bf16.msra.mxu0 0
        %1310 = vmatprep.subr.bf16.mxu0 0
        %1311 = vmatpush1.bf16.msra.mxu0 0
        %1312 = vmatprep.subr.bf16.mxu0 0
        %1313 = vmatpush1.bf16.msra.mxu0 0
        %1314 = vmatprep.subr.bf16.mxu0 0
        %1315 = vmatpush1.bf16.msra.mxu0 0
        %1316 = vmatprep.mubr.bf16.mxu0 0
        %1317 = vmatmul.mubr.bf16.gmra.mrb[0].mxu0 %v1279
        %v1318 = vpop.f32.mrb[0].mxu0
        %v1319 = vadd.f32 0.0, %v1318
        %v1320 = vpop.f32.mrb[0].mxu0
        %v1321 = vpop.f32.mrb[0].mxu0
        %v1322 = vpop.f32.mrb[0].mxu0
        %1323 = vdwg.mxu0
        %1324 = vrot.lane.b32.xlu0 %v491, 72
        %v1325 = vpop.permute.xlu0 %1324
        %v1327 = vsel %vm492, %v1275, 0
        %v1330 = vsel %vm615, %v1325, 0
        %1332 = vmatprep.subr.bf16.mxu0 0
        %1333 = vmatpush1.bf16.msra.mxu0 %v1330
        %1334 = vmatprep.subr.bf16.mxu0 0
        %1335 = vmatpush1.bf16.msra.mxu0 0
        %1336 = vmatprep.subr.bf16.mxu0 0
        %1337 = vmatpush1.bf16.msra.mxu0 0
        %1338 = vmatprep.subr.bf16.mxu0 0
        %1339 = vmatpush1.bf16.msra.mxu0 0
        %1340 = vmatprep.subr.bf16.mxu0 0
        %1341 = vmatpush1.bf16.msra.mxu0 0
        %1342 = vmatprep.subr.bf16.mxu0 0
        %1343 = vmatpush1.bf16.msra.mxu0 0
        %1344 = vmatprep.subr.bf16.mxu0 0
        %1345 = vmatpush1.bf16.msra.mxu0 0
        %1346 = vmatprep.subr.bf16.mxu0 0
        %1347 = vmatpush1.bf16.msra.mxu0 0
        %1348 = vmatprep.subr.bf16.mxu0 0
        %1349 = vmatpush1.bf16.msra.mxu0 0
        %1350 = vmatprep.subr.bf16.mxu0 0
        %1351 = vmatpush1.bf16.msra.mxu0 0
        %1352 = vmatprep.subr.bf16.mxu0 0
        %1353 = vmatpush1.bf16.msra.mxu0 0
        %1354 = vmatprep.subr.bf16.mxu0 0
        %1355 = vmatpush1.bf16.msra.mxu0 0
        %1356 = vmatprep.subr.bf16.mxu0 0
        %1357 = vmatpush1.bf16.msra.mxu0 0
        %1358 = vmatprep.subr.bf16.mxu0 0
        %1359 = vmatpush1.bf16.msra.mxu0 0
        %1360 = vmatprep.subr.bf16.mxu0 0
        %1361 = vmatpush1.bf16.msra.mxu0 0
        %1362 = vmatprep.subr.bf16.mxu0 0
        %1363 = vmatpush1.bf16.msra.mxu0 0
        %1364 = vmatprep.mubr.bf16.mxu0 0
        %1365 = vmatmul.mubr.bf16.gmra.mrb[0].mxu0 %v1327
        %v1366 = vpop.f32.mrb[0].mxu0
        %v1367 = vadd.f32 0.0, %v1366
        %v1368 = vpop.f32.mrb[0].mxu0
        %v1369 = vpop.f32.mrb[0].mxu0
        %v1370 = vpop.f32.mrb[0].mxu0
        %1371 = vdwg.mxu0
        %1374 = vrot.lane.b32.xlu0 %v879, 8
        %v1375 = vpop.permute.xlu0 %1374
        %1376 = vrot.lane.b32.xlu0 %v927, 8
        %v1377 = vpop.permute.xlu0 %1376
        %1382 = vrot.lane.b32.xlu0 %v1099, 16
        %v1383 = vpop.permute.xlu0 %1382
        %1384 = vrot.lane.b32.xlu0 %v1147, 16
        %v1385 = vpop.permute.xlu0 %1384
        %1390 = vrot.lane.b32.xlu0 %v1319, 24
        %v1391 = vpop.permute.xlu0 %1390
        %1392 = vrot.lane.b32.xlu0 %v1367, 24
        %v1393 = vpop.permute.xlu0 %1392
        %v1396 = vsel %vm492, %v654, %v1375
        %v1397 = vsel %vm492, %v703, %v1377
        %v1398 = vsel %vm368, %v1396, %v1383
        %v1399 = vsel %vm368, %v1397, %v1385
        %vm1400 = vcmask 195584
        %v1401 = vsel %vm1400, %v1398, %v1391
        %v1402 = vsel %vm1400, %v1399, %v1393
        %v1403 = vadd.f32 %v407, %v1401
        %v1404 = vadd.f32 %v410, %v1402
        %v1405 = vpack.c.bf16 %v1404, %v1403
        %v1406 = vld [vmem:[#allocation8] sm:$0xf]
        %v1407 = vld [vmem:[#allocation8 + $0x4] sm:$0xf]
        %v1408 = vld [vmem:[#allocation8 + $0x8] sm:$0xf]
        %v1409 = vld [vmem:[#allocation8 + $0xc] sm:$0xf]
        %v1410 = vlaneseq
        %v1411 = vshrl.u32 %v1410, 7
        %v1412 = vsub.s32 0, %v1411
        %v1413 = vrot.slane %v350, %v1412
        %v1418 = vunpack.c.l.b16 %v1406
        %v1419 = vunpack.c.l.b16 %v1407
        %v1420 = vunpack.c.l.b16 %v1408
        %v1421 = vunpack.c.l.b16 %v1409
        %v1422 = vpack.c.b16 %v1419, %v1418
        %v1423 = vpack.c.b16 %v1421, %v1420
        %vm1426 = vcmask 261120
        %v1428 = vsel %vm1426, %v1405, 0
        %1430 = vmatprep.subr.bf16.mxu0 0
        %1431 = vmatpush1.bf16.msra.mxu0 %v1422
        %1432 = vmatprep.subr.bf16.mxu0 0
        %1433 = vmatpush1.bf16.msra.mxu0 %v1423
        %1434 = vmatprep.subr.bf16.mxu0 0
        %1435 = vmatpush1.bf16.msra.mxu0 0
        %1436 = vmatprep.subr.bf16.mxu0 0
        %1437 = vmatpush1.bf16.msra.mxu0 0
        %1438 = vmatprep.subr.bf16.mxu0 0
        %1439 = vmatpush1.bf16.msra.mxu0 0
        %1440 = vmatprep.subr.bf16.mxu0 0
        %1441 = vmatpush1.bf16.msra.mxu0 0
        %1442 = vmatprep.subr.bf16.mxu0 0
        %1443 = vmatpush1.bf16.msra.mxu0 0
        %1444 = vmatprep.subr.bf16.mxu0 0
        %1445 = vmatpush1.bf16.msra.mxu0 0
        %1446 = vmatprep.subr.bf16.mxu0 0
        %1447 = vmatpush1.bf16.msra.mxu0 0
        %1448 = vmatprep.subr.bf16.mxu0 0
        %1449 = vmatpush1.bf16.msra.mxu0 0
        %1450 = vmatprep.subr.bf16.mxu0 0
        %1451 = vmatpush1.bf16.msra.mxu0 0
        %1452 = vmatprep.subr.bf16.mxu0 0
        %1453 = vmatpush1.bf16.msra.mxu0 0
        %1454 = vmatprep.subr.bf16.mxu0 0
        %1455 = vmatpush1.bf16.msra.mxu0 0
        %1456 = vmatprep.subr.bf16.mxu0 0
        %1457 = vmatpush1.bf16.msra.mxu0 0
        %1458 = vmatprep.subr.bf16.mxu0 0
        %1459 = vmatpush1.bf16.msra.mxu0 0
        %1460 = vmatprep.subr.bf16.mxu0 0
        %1461 = vmatpush1.bf16.msra.mxu0 0
        %1462 = vmatprep.mubr.bf16.mxu0 0
        %1463 = vmatmul.mubr.bf16.gmra.mrb[0].mxu0 %v1428
        %v1464 = vpop.f32.mrb[0].mxu0
        %v1465 = vadd.f32 %v1413, %v1464
        %v1466 = vpop.f32.mrb[0].mxu0
        %v1467 = vpop.f32.mrb[0].mxu0
        %v1468 = vadd.f32 %v1413, %v1467
        %v1469 = vpop.f32.mrb[0].mxu0
        %1470 = vdwg.mxu0
        %v1471 = vmax.f32 %v1465, 0.0
        %v1472 = vmax.f32 %v1468, 0.0
        %v1473 = vadd.f32 %v1403, %v1471
        %v1474 = vadd.f32 %v1404, %v1472
        %1475 = vst.msk [vmem:[%s338] sm:$0xff] %vm1426, %v1473
        %1476 = vst.msk [vmem:[%s338 + $0x8] sm:$0xff] %vm1426, %v1474
        %s1477 = sand.u32 %s171, 1
        %s1478 = scalar_lea.sflag [#allocation4], %s1477
        %s1479 = sand.u32 %s171, 1
        %s1480 = smul.addr %s1479, 16
        %s1481 = scalar_lea.vmem [#allocation10], %s1480
        // Predicated region
        $region61: #{tpu_custom_call.1} parent=43 // pred_check
          %p1482 = pneg %p181
        $region62: #{tpu_custom_call.1} parent=43 // pred_check_branch
          %1484 = sbr.rel (%p1482) target = $region64
        $region63: #{tpu_custom_call.1} parent=43 // pred_region
          %s1485 = smul.u32 2, %s27
          %s1487 = ssub.s32 256, 256
          %1488 = vsyncadd %s1478, %s1487
          %s1489 = smul.addr %s1485, 128
          %s1490 = scalar_lea.hbm %s6, %s1489
          %s1491 = sshll.u32 %s1481, 4
          %s1492 = int_to_ptr.vmem [resolvable:$true] %s1491
          %1497 = dma.vmem_to_hbm [thread:$0]  %s1492, 256, %s1490, %s1478, 128, 128, 8
        $region64: #{tpu_custom_call.1} parent=43 // pred_fallthru
          _
      $region44: #{tpu_custom_call.1} parent=5 // pred_fallthru
        _
      %p1498 = scmp.le.s32.totalorder 2, %s22
      // Predicated region
      $region65: #{tpu_custom_call.1} parent=5 // pred_check
        %p1499 = pneg %p1498
      $region66: #{tpu_custom_call.1} parent=5 // pred_check_branch
        %1501 = sbr.rel (%p1499) target = $region68
      $region67: #{tpu_custom_call.1} parent=5 // pred_region
        %s1502 = ssub.s32 %s22, 2
        // Predicated region
        $region69: #{tpu_custom_call.1} parent=67 // pred_check
          %p1503 = pneg %p187
        $region70: #{tpu_custom_call.1} parent=67 // pred_check_branch
          %1505 = sbr.rel (%p1503) target = $region72
        $region71: #{tpu_custom_call.1} parent=67 // pred_region
          %s1506 = sand.u32 %s172, 1
          %s1507 = scalar_lea.sflag [#allocation4], %s1506
          %s1508 = sand.u32 %s172, 1
          %s1509 = smul.addr %s1508, 16
          %s1510 = scalar_lea.vmem [#allocation10], %s1509
          %1511 = dma.done %s1507, 256
        $region72: #{tpu_custom_call.1} parent=67 // pred_fallthru
          _
      $region68: #{tpu_custom_call.1} parent=5 // pred_fallthru
        _
    $region6: #{tpu_custom_call.1} parent=1 // loop_footer
      %s26 = sadd.s32 1, %s22
    $region7: #{tpu_custom_call.1} parent=1 // loop_footer_branch
      %21 = sbr.rel target = $region3
    $region8: #{tpu_custom_call.1} parent=1 // loop_exit
      _
    %1512 = vsyncpa [#allocation3], 1
    %s1513 = scalar_lea.sflag [#allocation3], 1
    %1514 = vsyncpa %s1513, 1
    %1515 = vsyncpa [#allocation6], 1
    %s1516 = scalar_lea.sflag [#allocation6], 1
    %1517 = vsyncpa %s1516, 1
    %1518 = vsyncpa [#allocation9], 1
    %1519 = vsyncpa [#allocation4], 1
    %s1520 = scalar_lea.sflag [#allocation4], 1
    %1521 = vsyncpa %s1520, 1

</llo_original>
